<compile_context>
chip_gen: v5e
topology: v5e:2x2
jax: 0.10.0
libtpu: 0.0.40
codegen_flags: <defaults>
</compile_context>

<pallas_src>
import jax
import jax.numpy as jnp
from jax import lax
from jax.experimental import pallas as pl
from jax.experimental.pallas import tpu as pltpu


# ----------------------------------------------------------------------------
# Fused kernel: embedding_adapter + info_projector + cosine similarity
# ----------------------------------------------------------------------------
def _fused_kernel(x_ref, q_ref, wa_ref, ba_ref, wp_ref, bp_ref,
                  adapted_ref, sim_ref):
    # ---- 1) embedding_adapter: Linear(H -> D) + ReLU ----
    # bf16 MXU inputs, f32 accumulation, f32 elementwise.
    x_bf16 = x_ref[...].astype(jnp.bfloat16)                           # [TB, H]
    adapted = jnp.dot(x_bf16, wa_ref[...],
                      preferred_element_type=jnp.float32)              # [TB, D] f32
    adapted = jnp.maximum(adapted + ba_ref[...], 0.0)                  # ReLU
    adapted_ref[...] = adapted.astype(adapted_ref.dtype)
    # TODO(synk): nn.Dropout(0.3) is identity in eval mode; training-mode stochastic
    # dropout (pltpu.prng_seed / prng_random_bits) not emitted here.

    # ---- 2) info_projector on the context tile and on the 1-row query ----
    adapted_bf16 = adapted.astype(jnp.bfloat16)     # cast once, reused as MXU LHS
    proj_c = jnp.dot(adapted_bf16, wp_ref[...],
                     preferred_element_type=jnp.float32) + bp_ref[...]   # [TB, D]
    # Query projection is recomputed per row tile: 1/TB of the tile matmul, near-free,
    # and keeps grid steps fully independent ("parallel" semantics / megacore safe).
    proj_q = jnp.dot(q_ref[...].astype(jnp.bfloat16), wp_ref[...],
                     preferred_element_type=jnp.float32) + bp_ref[...]   # [1, D]

    # ---- 3) cosine similarity: raw dot FIRST, normalize the [1, TB] row after ----
    # q · cᵀ without materializing a transpose (contract the last dims of both operands).
    sims_raw = lax.dot_general(proj_q, proj_c, (((1,), (1,)), ((), ())),
                               preferred_element_type=jnp.float32)       # [1, TB]
    # Context squared norms, delivered lane-positioned via a tiny ones-row contraction
    # on the MXU (avoids a sublane->lane relayout of a cross-lane reduce result).
    sq_c = proj_c * proj_c                                               # [TB, D]
    norm_c_sq = lax.dot_general(jnp.ones((1, sq_c.shape[1]), jnp.float32), sq_c,
                                (((1,), (1,)), ((), ())),
                                preferred_element_type=jnp.float32)      # [1, TB]
    norm_q_sq = jnp.sum(proj_q * proj_q, axis=-1, keepdims=True)         # [1, 1]
    # torch cosine_similarity eps=1e-8 clamp folded into max on squared norms (clamping
    # each norm vs. the product only differs when both are ~0 — negligible).
    inv_scale = (lax.rsqrt(jnp.maximum(norm_c_sq, 1e-16)) *
                 lax.rsqrt(jnp.maximum(norm_q_sq, 1e-16)))               # [1, TB]
    sims = sims_raw * inv_scale                                          # [1, TB]

    # ---- 4) lane-dense writeback (no concat copy; zero-fill only if lane-padded) ----
    tb = sims.shape[1]
    if sim_ref.shape[1] == tb:
        sim_ref[...] = sims.astype(sim_ref.dtype)       # full-lane unmasked store
    else:  # single-tile path with B < 128: zero-init, then store the first B lanes
        sim_ref[...] = jnp.zeros_like(sim_ref)
        sim_ref[:, :tb] = sims.astype(sim_ref.dtype)


def fused_adapter_and_retrieval(x, q, wa, ba, wp, bp, *, row_tile=128):
    """x: [B, H] f32, q: [1, D] f32 (H == D), wa: [H, D] bf16, ba: [1, D] f32,
    wp: [D, D] bf16, bp: [1, D] f32
    -> (adapted [B, D] f32, cosine sims [1, pad128] f32, lane-dense padded)."""
    B, H = x.shape
    D = wa.shape[1]

    if B <= row_tile:
        TB = B                       # single full-dim row tile (any B allowed)
        grid = 1
        B_pad = B
    else:
        TB = row_tile                # multiple of 128 -> lane-dense sims chunk per tile
        grid = pl.cdiv(B, TB)
        B_pad = grid * TB
        if B_pad != B:               # pad rows; padded rows are sliced off below
            x = jnp.concatenate([x, jnp.zeros((B_pad - B, H), x.dtype)], axis=0)

    P = pl.cdiv(B_pad, 128) * 128    # lane-dense similarity width
    sim_block = TB if grid > 1 else P

    # Per-chip tuning at production sizes (H=D=768, large B):
    #   v6e: row_tile 1024-2048 + vmem_limit_bytes toward ~100 MiB (HBM-bound regime);
    #   v7x: row_tile 512-1024 (64 MiB VMEM) + even tile count for 2-TC sharding;
    #   v5e: row_tile <= 256 or raise the 16 MiB scoped-VMEM default.
    # Weights/biases/query use constant index_maps (DMA'd once, VMEM-resident);
    # pl.Buffered(1) on those specs would trim their unused second buffer.
    adapted_pad, sims_pad = pl.pallas_call(
        _fused_kernel,
        out_shape=(jax.ShapeDtypeStruct((B_pad, D), jnp.float32),
                   jax.ShapeDtypeStruct((1, P), jnp.float32)),
        grid_spec=pl.GridSpec(
            grid=(grid,),
            in_specs=[
                pl.BlockSpec((TB, H), lambda i: (i, 0)),   # cls embeddings (row tile)
                pl.BlockSpec((1, D), lambda i: (0, 0)),    # query embedding (resident)
                pl.BlockSpec((H, D), lambda i: (0, 0)),    # adapter weight (bf16, resident)
                pl.BlockSpec((1, D), lambda i: (0, 0)),    # adapter bias
                pl.BlockSpec((D, D), lambda i: (0, 0)),    # projector weight (bf16, resident)
                pl.BlockSpec((1, D), lambda i: (0, 0)),    # projector bias
            ],
            out_specs=(pl.BlockSpec((TB, D), lambda i: (i, 0)),
                       pl.BlockSpec((1, sim_block), lambda i: (0, i))),
        ),
        compiler_params=pltpu.CompilerParams(
            dimension_semantics=("parallel",)),   # independent row tiles; v7x megacore
    )(x, q, wa, ba, wp, bp)
    return adapted_pad[:B], sims_pad


# ----------------------------------------------------------------------------
# Parameters (nn.Linear-style init; weights stored [in, out] and streamed as bf16)
# ----------------------------------------------------------------------------
def init_params(key, hidden=256, embed_dim=256):
    k1, k2, k3, k4 = jax.random.split(key, 4)
    s1 = 1.0 / jnp.sqrt(hidden)
    s2 = 1.0 / jnp.sqrt(embed_dim)
    return {
        "adapter_w": jax.random.uniform(
            k1, (hidden, embed_dim), jnp.float32, -s1, s1).astype(jnp.bfloat16),
        "adapter_b": jax.random.uniform(k2, (1, embed_dim), jnp.float32, -s1, s1),
        "proj_w": jax.random.uniform(
            k3, (embed_dim, embed_dim), jnp.float32, -s2, s2).astype(jnp.bfloat16),
        "proj_b": jax.random.uniform(k4, (1, embed_dim), jnp.float32, -s2, s2),
    }


# ----------------------------------------------------------------------------
# Model wrapper (glue in plain JAX)
# ----------------------------------------------------------------------------
def hybrid_forward(params, cls_embedding, query_embedding=None, k=3):
    """
    cls_embedding:   [B, H]  (stand-in for BERT last_hidden_state[:, 0, :])
    query_embedding: [1, H]  or None (query=None in forward -> retrieval is skipped)
    Returns dict mirroring the PyTorch forward (text generation untranslatable).
    """
    B, H = cls_embedding.shape
    D = params["adapter_w"].shape[1]
    assert H == D, "info_projector is applied to the raw query embedding, so H must equal D"

    # TODO(synk): for v6e HBM-bound sizes, have the upstream producer emit bf16
    # cls embeddings directly (halves the dominant input stream); kept f32 here.
    q = query_embedding if query_embedding is not None else jnp.zeros((1, D), jnp.float32)
    adapted, sims_padded = fused_adapter_and_retrieval(
        cls_embedding, q,
        params["adapter_w"], params["adapter_b"],
        params["proj_w"], params["proj_b"])

    if query_embedding is None:
        # retrieve_information(None, context) returns context unchanged.
        return {"embeddings": adapted, "retrieved_info": adapted,
                "similarities": None, "cosine_similarities": None}

    cos = sims_padded[:, :B]                        # raw cosine similarities [1, B]
    # F.softmax(similarities, dim=0) over the size-1 query axis is exactly all-ones;
    # emit the constant (faithful to the reference, no EUP exp/reciprocal needed).
    sims = jnp.ones_like(cos)

    top_k = min(k, sims.size)
    if top_k > 1:
        _, idx = jax.lax.top_k(sims.reshape(-1), top_k)
        retrieved = adapted[idx]
    else:
        retrieved = adapted[jnp.argmax(sims)][None, :]

    # TODO(synk): BERT encoding, GPT-2 autoregressive generation and tokenizer decode
    # have no Pallas equivalent; "generated_text" is omitted and retrieved rows are
    # returned as tensors.
    return {"embeddings": adapted, "retrieved_info": retrieved,
            "similarities": sims, "cosine_similarities": cos}


if __name__ == "__main__":
    key = jax.random.PRNGKey(0)
    k_params, k_cls, k_query = jax.random.split(key, 3)

    # Small stand-ins for (batch, bert_hidden=768, embedding_dim=768).
    # B > 128 so the row-tiled path is exercised (grid=(2,)); an even tile count lets
    # the "parallel" grid axis shard across both v7x TensorCores.
    B, H, D = 256, 256, 256
    params = init_params(k_params, hidden=H, embed_dim=D)

    # Synthetic BERT CLS embeddings for the input texts and the query.
    cls_embedding = jax.random.normal(k_cls, (B, H), jnp.float32)
    query_embedding = jax.random.normal(k_query, (1, H), jnp.float32)

    out = hybrid_forward(params, cls_embedding, query_embedding)
    jax.block_until_ready(out["embeddings"])
    jax.block_until_ready(out["retrieved_info"])
    jax.block_until_ready(out["similarities"])
    jax.block_until_ready(out["cosine_similarities"])

    assert out["embeddings"].shape == (B, D)
    assert out["similarities"].shape == (1, B)
    assert out["cosine_similarities"].shape == (1, B)
    assert out["retrieved_info"].shape == (3, D)
    assert bool(jnp.all(out["embeddings"] >= 0.0))                  # ReLU
    assert bool(jnp.all(jnp.abs(out["cosine_similarities"]) <= 1.01))  # cosine range
    print("KERNEL_OK")
</pallas_src>

<mosaic_0001>
module attributes {stable_mosaic.version = 11 : i64} {
  func.func @_fused_kernel(%arg0: i32, %arg1: memref<128x256xf32, #tpu.memory_space<vmem>>, %arg2: memref<1x256xf32, #tpu.memory_space<vmem>>, %arg3: memref<256x256xbf16, #tpu.memory_space<vmem>>, %arg4: memref<1x256xf32, #tpu.memory_space<vmem>>, %arg5: memref<256x256xbf16, #tpu.memory_space<vmem>>, %arg6: memref<1x256xf32, #tpu.memory_space<vmem>>, %arg7: memref<128x256xf32, #tpu.memory_space<vmem>>, %arg8: memref<1x128xf32, #tpu.memory_space<vmem>>) attributes {dimension_semantics = [#tpu.dimension_semantics<parallel>], iteration_bounds = array<i64: 2>, scalar_prefetch = 0 : i64, scratch_operands = 0 : i64, tpu.core_type = #tpu.core_type<tc>, window_params = [{transform_indices = @transform_0, window_bounds = array<i64: 128, 256>}, {pipeline_mode = #tpu.pipeline_mode<synchronous>, transform_indices = @transform_1, window_bounds = array<i64: 1, 256>}, {pipeline_mode = #tpu.pipeline_mode<synchronous>, transform_indices = @transform_2, window_bounds = array<i64: 256, 256>}, {pipeline_mode = #tpu.pipeline_mode<synchronous>, transform_indices = @transform_3, window_bounds = array<i64: 1, 256>}, {pipeline_mode = #tpu.pipeline_mode<synchronous>, transform_indices = @transform_4, window_bounds = array<i64: 256, 256>}, {pipeline_mode = #tpu.pipeline_mode<synchronous>, transform_indices = @transform_5, window_bounds = array<i64: 1, 256>}, {transform_indices = @transform_6, window_bounds = array<i64: 128, 256>}, {transform_indices = @transform_7, window_bounds = array<i64: 1, 128>}]} {
    %c0 = arith.constant 0 : index
    %c0_0 = arith.constant 0 : index
    %0 = vector.load %arg1[%c0, %c0_0] : memref<128x256xf32, #tpu.memory_space<vmem>>, vector<128x256xf32>
    %1 = arith.truncf %0 : vector<128x256xf32> to vector<128x256xbf16>
    %c0_1 = arith.constant 0 : index
    %c0_2 = arith.constant 0 : index
    %2 = vector.load %arg3[%c0_1, %c0_2] : memref<256x256xbf16, #tpu.memory_space<vmem>>, vector<256x256xbf16>
    %cst = arith.constant dense<0.000000e+00> : vector<128x256xf32>
    %3 = tpu.matmul %1, %2, %cst {dimension_numbers = #tpu.dot_dimension_numbers<[1], [0], [0], [1], [0, 0, 1, 1], [], []>} : vector<128x256xbf16>, vector<256x256xbf16>, vector<128x256xf32> -> vector<128x256xf32>
    %c0_3 = arith.constant 0 : index
    %c0_4 = arith.constant 0 : index
    %4 = vector.load %arg4[%c0_3, %c0_4] : memref<1x256xf32, #tpu.memory_space<vmem>>, vector<1x256xf32>
    %5 = vector.broadcast %4 : vector<1x256xf32> to vector<128x256xf32>
    %6 = arith.addf %3, %5 : vector<128x256xf32>
    %cst_5 = arith.constant 0.000000e+00 : f32
    %7 = vector.broadcast %cst_5 : f32 to vector<128x256xf32>
    %8 = arith.maximumf %6, %7 : vector<128x256xf32>
    %c0_6 = arith.constant 0 : index
    %c0_7 = arith.constant 0 : index
    %9 = vector.load %arg7[%c0_6, %c0_7] : memref<128x256xf32, #tpu.memory_space<vmem>>, vector<128x256xf32>
    tpu.vector_store %arg7[%c0_6, %c0_7], %8 {strides = array<i32>} : memref<128x256xf32, #tpu.memory_space<vmem>>, vector<128x256xf32>,
    %10 = arith.truncf %8 : vector<128x256xf32> to vector<128x256xbf16>
    %c0_8 = arith.constant 0 : index
    %c0_9 = arith.constant 0 : index
    %11 = vector.load %arg5[%c0_8, %c0_9] : memref<256x256xbf16, #tpu.memory_space<vmem>>, vector<256x256xbf16>
    %cst_10 = arith.constant dense<0.000000e+00> : vector<128x256xf32>
    %12 = tpu.matmul %10, %11, %cst_10 {dimension_numbers = #tpu.dot_dimension_numbers<[1], [0], [0], [1], [0, 0, 1, 1], [], []>} : vector<128x256xbf16>, vector<256x256xbf16>, vector<128x256xf32> -> vector<128x256xf32>
    %c0_11 = arith.constant 0 : index
    %c0_12 = arith.constant 0 : index
    %13 = vector.load %arg6[%c0_11, %c0_12] : memref<1x256xf32, #tpu.memory_space<vmem>>, vector<1x256xf32>
    %14 = vector.broadcast %13 : vector<1x256xf32> to vector<128x256xf32>
    %15 = arith.addf %12, %14 : vector<128x256xf32>
    %c0_13 = arith.constant 0 : index
    %c0_14 = arith.constant 0 : index
    %16 = vector.load %arg2[%c0_13, %c0_14] : memref<1x256xf32, #tpu.memory_space<vmem>>, vector<1x256xf32>
    %17 = arith.truncf %16 : vector<1x256xf32> to vector<1x256xbf16>
    %c0_15 = arith.constant 0 : index
    %c0_16 = arith.constant 0 : index
    %18 = vector.load %arg5[%c0_15, %c0_16] : memref<256x256xbf16, #tpu.memory_space<vmem>>, vector<256x256xbf16>
    %cst_17 = arith.constant dense<0.000000e+00> : vector<1x256xf32>
    %19 = tpu.matmul %17, %18, %cst_17 {dimension_numbers = #tpu.dot_dimension_numbers<[1], [0], [0], [1], [0, 0, 1, 1], [], []>} : vector<1x256xbf16>, vector<256x256xbf16>, vector<1x256xf32> -> vector<1x256xf32>
    %c0_18 = arith.constant 0 : index
    %c0_19 = arith.constant 0 : index
    %20 = vector.load %arg6[%c0_18, %c0_19] : memref<1x256xf32, #tpu.memory_space<vmem>>, vector<1x256xf32>
    %21 = arith.addf %19, %20 : vector<1x256xf32>
    %cst_20 = arith.constant dense<0.000000e+00> : vector<1x128xf32>
    %22 = tpu.matmul %21, %15, %cst_20 {dimension_numbers = #tpu.dot_dimension_numbers<[1], [1], [0], [0], [0, 0, 1, 0], [], []>} : vector<1x256xf32>, vector<128x256xf32>, vector<1x128xf32> -> vector<1x128xf32>
    %23 = arith.mulf %15, %15 : vector<128x256xf32>
    %cst_21 = arith.constant 1.000000e+00 : f32
    %24 = vector.broadcast %cst_21 : f32 to vector<1x256xf32>
    %cst_22 = arith.constant dense<0.000000e+00> : vector<1x128xf32>
    %25 = tpu.matmul %24, %23, %cst_22 {dimension_numbers = #tpu.dot_dimension_numbers<[1], [1], [0], [0], [0, 0, 1, 0], [], []>} : vector<1x256xf32>, vector<128x256xf32>, vector<1x128xf32> -> vector<1x128xf32>
    %26 = arith.mulf %21, %21 : vector<1x256xf32>
    %cst_23 = arith.constant dense<0.000000e+00> : vector<1xf32>
    %27 = vector.multi_reduction <add>, %26, %cst_23 [1] : vector<1x256xf32> to vector<1xf32>
    %28 = vector.shape_cast %27 : vector<1xf32> to vector<1x1xf32>
    %cst_24 = arith.constant 1.000000e-16 : f32
    %29 = vector.broadcast %cst_24 : f32 to vector<1x128xf32>
    %30 = arith.maximumf %25, %29 : vector<1x128xf32>
    %31 = math.rsqrt %30 : vector<1x128xf32>
    %cst_25 = arith.constant 1.000000e-16 : f32
    %32 = vector.broadcast %cst_25 : f32 to vector<1x1xf32>
    %33 = arith.maximumf %28, %32 : vector<1x1xf32>
    %34 = math.rsqrt %33 : vector<1x1xf32>
    %35 = vector.broadcast %34 : vector<1x1xf32> to vector<1x128xf32>
    %36 = arith.mulf %31, %35 : vector<1x128xf32>
    %37 = arith.mulf %22, %36 : vector<1x128xf32>
    %c0_26 = arith.constant 0 : index
    %c0_27 = arith.constant 0 : index
    %38 = vector.load %arg8[%c0_26, %c0_27] : memref<1x128xf32, #tpu.memory_space<vmem>>, vector<1x128xf32>
    tpu.vector_store %arg8[%c0_26, %c0_27], %37 {strides = array<i32>} : memref<1x128xf32, #tpu.memory_space<vmem>>, vector<1x128xf32>,
    return
  }
  func.func @transform_0(%arg0: i32) -> (i32, i32) {
    %c0_i32 = arith.constant 0 : i32
    %c0_i32_0 = arith.constant 0 : i32
    return %arg0, %c0_i32 : i32, i32
  }
  func.func @transform_1(%arg0: i32) -> (i32, i32) {
    %c0_i32 = arith.constant 0 : i32
    %c0_i32_0 = arith.constant 0 : i32
    %c0_i32_1 = arith.constant 0 : i32
    return %c0_i32, %c0_i32_0 : i32, i32
  }
  func.func @transform_2(%arg0: i32) -> (i32, i32) {
    %c0_i32 = arith.constant 0 : i32
    %c0_i32_0 = arith.constant 0 : i32
    %c0_i32_1 = arith.constant 0 : i32
    return %c0_i32, %c0_i32_0 : i32, i32
  }
  func.func @transform_3(%arg0: i32) -> (i32, i32) {
    %c0_i32 = arith.constant 0 : i32
    %c0_i32_0 = arith.constant 0 : i32
    %c0_i32_1 = arith.constant 0 : i32
    return %c0_i32, %c0_i32_0 : i32, i32
  }
  func.func @transform_4(%arg0: i32) -> (i32, i32) {
    %c0_i32 = arith.constant 0 : i32
    %c0_i32_0 = arith.constant 0 : i32
    %c0_i32_1 = arith.constant 0 : i32
    return %c0_i32, %c0_i32_0 : i32, i32
  }
  func.func @transform_5(%arg0: i32) -> (i32, i32) {
    %c0_i32 = arith.constant 0 : i32
    %c0_i32_0 = arith.constant 0 : i32
    %c0_i32_1 = arith.constant 0 : i32
    return %c0_i32, %c0_i32_0 : i32, i32
  }
  func.func @transform_6(%arg0: i32) -> (i32, i32) {
    %c0_i32 = arith.constant 0 : i32
    %c0_i32_0 = arith.constant 0 : i32
    return %arg0, %c0_i32 : i32, i32
  }
  func.func @transform_7(%arg0: i32) -> (i32, i32) {
    %c0_i32 = arith.constant 0 : i32
    %c0_i32_0 = arith.constant 0 : i32
    return %c0_i32, %arg0 : i32, i32
  }
}

</mosaic_0001>

<llo_original>
// kernel: tpu_custom_call.1
$region0: #{tpu_custom_call.1}
  #allocation0 [shape = 'u32[]', space=smem, size = 0x4, offset = 0x4, fixed_abs, tag = 'smem constant byte address 0x4 - core index']
  #allocation1 [shape = 'u32[72,128]{1,0:T(1,128)}', space=vmem, size = 0x9000, scoped, tag = 'internal scratch']
  %s0 = inlined_call_operand.hbm [shape: f32[256,256], index: 0, kind: input, shape index: {}]
  %s1 = inlined_call_operand.hbm [shape: f32[1,256], index: 1, kind: input, shape index: {}]
  %s2 = inlined_call_operand.hbm [shape: bf16[256,256], index: 2, kind: input, shape index: {}]
  %s3 = inlined_call_operand.vmem [shape: f32[1,256], index: 3, kind: input, shape index: {}]
  %s4 = inlined_call_operand.hbm [shape: bf16[256,256], index: 4, kind: input, shape index: {}]
  %s5 = inlined_call_operand.vmem [shape: f32[1,256], index: 5, kind: input, shape index: {}]
  %s6 = inlined_call_operand.hbm [shape: f32[256,256], index: 6, kind: output, shape index: {0}]
  %s7 = inlined_call_operand.hbm [shape: f32[1,256], index: 7, kind: output, shape index: {1}]
  %8 = xla_tuple %s6, %s7
  %s9 = sld [smem:[#allocation0]]
  $region81: #{tpu_custom_call.1} parent=0
    _
  %s11 = ssub.s32 1, %s9
  %s12 = scalar_select 0, %s11, %s9
  $region1: #{tpu_custom_call.1} parent=0
    #allocation2 [shape = 'u8[262144]{0}', space=vmem, size = 0x40000, scoped, tag = 'input window, operand 0']
    #allocation3 [shape = 's32[2]{0}', space=sflag, size = 0x8, scoped, tag = 'scoped memory for tpu_custom_call.1']
    #allocation4 [shape = 's32[2]{0}', space=sflag, size = 0x8, scoped, tag = 'scoped memory for tpu_custom_call.1']
    #allocation5 [shape = 'u8[1024]{0}', space=vmem, size = 0x400, scoped, tag = 'input window, operand 1, single buffered']
    #allocation6 [shape = 's32[1]{0}', space=sflag, size = 0x4, scoped, tag = 'scoped memory for tpu_custom_call.1']
    #allocation7 [shape = 'u8[131072]{0}', space=vmem, size = 0x20000, scoped, tag = 'input window, operand 2, single buffered']
    #allocation8 [shape = 'u8[131072]{0}', space=vmem, size = 0x20000, scoped, tag = 'input window, operand 4, single buffered']
    #allocation9 [shape = 's32[1]{0}', space=sflag, size = 0x4, scoped, tag = 'scoped memory for tpu_custom_call.1']
    #allocation10 [shape = 'u8[262144]{0}', space=vmem, size = 0x40000, scoped, tag = 'output window, operand 0']
    #allocation11 [shape = 'u8[1024]{0}', space=vmem, size = 0x400, scoped, tag = 'output window, operand 1']
    #allocation12 [shape = 's32[2]{0}', space=sflag, size = 0x8, scoped, tag = 'scoped memory for tpu_custom_call.1']
    %13 = vsyncpa [#allocation3], 0
    %s14 = scalar_lea.sflag [#allocation3], 1
    %15 = vsyncpa %s14, 0
    %16 = vsyncpa [#allocation6], 0
    %17 = vsyncpa [#allocation9], 0
    %18 = vsyncpa [#allocation4], 0
    %s19 = scalar_lea.sflag [#allocation4], 1
    %20 = vsyncpa %s19, 0
    %21 = vsyncpa [#allocation12], 0
    %s22 = scalar_lea.sflag [#allocation12], 1
    %23 = vsyncpa %s22, 0
    loop: start=0, step=1, limit=4
    $region2: #{tpu_custom_call.1} parent=1 // loop_pre_header
      _
    $region3: #{tpu_custom_call.1} parent=1 // loop_header
      %s25 = sphi 0, %s29
      %p26 = scmp.ge.s32.totalorder %s25, 4
      %s35 = sphi 0, %s37
      %s38 = sphi 0, %s35
      %s39 = sphi 0, %s38
      %s55 = sphi 0, %s39
      %s59 = sphi 0, %s59
      %s61 = sphi 0, %s59
      %s62 = sphi 0, %s61
      %s76 = sphi 0, %s62
      %s80 = sphi 0, %s80
      %s82 = sphi 0, %s80
      %s83 = sphi 0, %s82
      %s97 = sphi 0, %s83
      %s101 = sphi 0, %s101
      %s103 = sphi 0, %s101
      %s104 = sphi 0, %s103
      %s118 = sphi 0, %s104
      %s122 = sphi 0, %s122
      %s124 = sphi 0, %s122
      %s125 = sphi 0, %s124
      %s139 = sphi 0, %s125
      %s143 = sphi 0, %s143
      %s145 = sphi 0, %s143
      %s146 = sphi 0, %s145
      %s160 = sphi 0, %s146
      %s166 = sphi 0, %s168
      %s169 = sphi 0, %s166
      %s170 = sphi 0, %s169
      %s186 = sphi 0, %s170
      %s192 = sphi 0, %s194
      %s195 = sphi 0, %s192
      %s196 = sphi 0, %s195
      %s212 = sphi 0, %s196
    $region4: #{tpu_custom_call.1} parent=1 // loop_header_branch
      %28 = sbr.rel (%p26) target = $region8
    $region5: #{tpu_custom_call.1} parent=1 // loop_body
      %s30 = ssub.s32 %s25, 1
      %s31 = ssub.s32 %s25, 2
      %s32 = sadd.s32 %s25, 1
      %s33 = ssub.s32 %s25, %s32
      %p34 = scmp.eq.s32.totalorder %s33, 0
      %s36 = sadd.s32 %s35, 1
      %s37 = scalar_select %p34, %s35, %s36
      %p40 = pneg %p34
      %p41 = scmp.eq.s32.totalorder %s25, 1
      %p42 = por %p40, %p41
      %p43 = scmp.ne.s32.totalorder %s35, %s38
      %p44 = scmp.eq.s32.totalorder %s25, 0
      %p45 = por %p43, %p44
      %p46 = scmp.ne.s32.totalorder %s35, %s38
      %p47 = scmp.eq.s32.totalorder %s30, 1
      %p48 = por %p46, %p47
      %p49 = scmp.ne.s32.totalorder %s38, %s39
      %p50 = scmp.eq.s32.totalorder %s30, 0
      %p51 = por %p49, %p50
      %p52 = scmp.ne.s32.totalorder %s38, %s39
      %p53 = scmp.eq.s32.totalorder %s31, 1
      %p54 = por %p52, %p53
      %p56 = scmp.ne.s32.totalorder %s39, %s55
      %p57 = scmp.eq.s32.totalorder %s31, 0
      %p58 = por %p56, %p57
      %s60 = sadd.s32 %s59, 1
      %p63 = scmp.eq.s32.totalorder %s25, 1
      %p64 = scmp.ne.s32.totalorder %s59, %s61
      %p65 = scmp.eq.s32.totalorder %s25, 0
      %p66 = por %p64, %p65
      %p67 = scmp.ne.s32.totalorder %s59, %s61
      %p68 = scmp.eq.s32.totalorder %s30, 1
      %p69 = por %p67, %p68
      %p70 = scmp.ne.s32.totalorder %s61, %s62
      %p71 = scmp.eq.s32.totalorder %s30, 0
      %p72 = por %p70, %p71
      %p73 = scmp.ne.s32.totalorder %s61, %s62
      %p74 = scmp.eq.s32.totalorder %s31, 1
      %p75 = por %p73, %p74
      %p77 = scmp.ne.s32.totalorder %s62, %s76
      %p78 = scmp.eq.s32.totalorder %s31, 0
      %p79 = por %p77, %p78
      %s81 = sadd.s32 %s80, 1
      %p84 = scmp.eq.s32.totalorder %s25, 1
      %p85 = scmp.ne.s32.totalorder %s80, %s82
      %p86 = scmp.eq.s32.totalorder %s25, 0
      %p87 = por %p85, %p86
      %p88 = scmp.ne.s32.totalorder %s80, %s82
      %p89 = scmp.eq.s32.totalorder %s30, 1
      %p90 = por %p88, %p89
      %p91 = scmp.ne.s32.totalorder %s82, %s83
      %p92 = scmp.eq.s32.totalorder %s30, 0
      %p93 = por %p91, %p92
      %p94 = scmp.ne.s32.totalorder %s82, %s83
      %p95 = scmp.eq.s32.totalorder %s31, 1
      %p96 = por %p94, %p95
      %p98 = scmp.ne.s32.totalorder %s83, %s97
      %p99 = scmp.eq.s32.totalorder %s31, 0
      %p100 = por %p98, %p99
      %s102 = sadd.s32 %s101, 1
      %p105 = scmp.eq.s32.totalorder %s25, 1
      %p106 = scmp.ne.s32.totalorder %s101, %s103
      %p107 = scmp.eq.s32.totalorder %s25, 0
      %p108 = por %p106, %p107
      %p109 = scmp.ne.s32.totalorder %s101, %s103
      %p110 = scmp.eq.s32.totalorder %s30, 1
      %p111 = por %p109, %p110
      %p112 = scmp.ne.s32.totalorder %s103, %s104
      %p113 = scmp.eq.s32.totalorder %s30, 0
      %p114 = por %p112, %p113
      %p115 = scmp.ne.s32.totalorder %s103, %s104
      %p116 = scmp.eq.s32.totalorder %s31, 1
      %p117 = por %p115, %p116
      %p119 = scmp.ne.s32.totalorder %s104, %s118
      %p120 = scmp.eq.s32.totalorder %s31, 0
      %p121 = por %p119, %p120
      %s123 = sadd.s32 %s122, 1
      %p126 = scmp.eq.s32.totalorder %s25, 1
      %p127 = scmp.ne.s32.totalorder %s122, %s124
      %p128 = scmp.eq.s32.totalorder %s25, 0
      %p129 = por %p127, %p128
      %p130 = scmp.ne.s32.totalorder %s122, %s124
      %p131 = scmp.eq.s32.totalorder %s30, 1
      %p132 = por %p130, %p131
      %p133 = scmp.ne.s32.totalorder %s124, %s125
      %p134 = scmp.eq.s32.totalorder %s30, 0
      %p135 = por %p133, %p134
      %p136 = scmp.ne.s32.totalorder %s124, %s125
      %p137 = scmp.eq.s32.totalorder %s31, 1
      %p138 = por %p136, %p137
      %p140 = scmp.ne.s32.totalorder %s125, %s139
      %p141 = scmp.eq.s32.totalorder %s31, 0
      %p142 = por %p140, %p141
      %s144 = sadd.s32 %s143, 1
      %p147 = scmp.eq.s32.totalorder %s25, 1
      %p148 = scmp.ne.s32.totalorder %s143, %s145
      %p149 = scmp.eq.s32.totalorder %s25, 0
      %p150 = por %p148, %p149
      %p151 = scmp.ne.s32.totalorder %s143, %s145
      %p152 = scmp.eq.s32.totalorder %s30, 1
      %p153 = por %p151, %p152
      %p154 = scmp.ne.s32.totalorder %s145, %s146
      %p155 = scmp.eq.s32.totalorder %s30, 0
      %p156 = por %p154, %p155
      %p157 = scmp.ne.s32.totalorder %s145, %s146
      %p158 = scmp.eq.s32.totalorder %s31, 1
      %p159 = por %p157, %p158
      %p161 = scmp.ne.s32.totalorder %s146, %s160
      %p162 = scmp.eq.s32.totalorder %s31, 0
      %p163 = por %p161, %p162
      %s164 = ssub.s32 %s25, %s32
      %p165 = scmp.eq.s32.totalorder %s164, 0
      %s167 = sadd.s32 %s166, 1
      %s168 = scalar_select %p165, %s166, %s167
      %p171 = pneg %p165
      %p172 = scmp.eq.s32.totalorder %s25, 1
      %p173 = por %p171, %p172
      %p174 = scmp.ne.s32.totalorder %s166, %s169
      %p175 = scmp.eq.s32.totalorder %s25, 0
      %p176 = por %p174, %p175
      %p177 = scmp.ne.s32.totalorder %s166, %s169
      %p178 = scmp.eq.s32.totalorder %s30, 1
      %p179 = por %p177, %p178
      %p180 = scmp.ne.s32.totalorder %s169, %s170
      %p181 = scmp.eq.s32.totalorder %s30, 0
      %p182 = por %p180, %p181
      %p183 = scmp.ne.s32.totalorder %s169, %s170
      %p184 = scmp.eq.s32.totalorder %s31, 1
      %p185 = por %p183, %p184
      %p187 = scmp.ne.s32.totalorder %s170, %s186
      %p188 = scmp.eq.s32.totalorder %s31, 0
      %p189 = por %p187, %p188
      %s190 = ssub.s32 %s25, %s32
      %p191 = scmp.eq.s32.totalorder %s190, 0
      %s193 = sadd.s32 %s192, 1
      %s194 = scalar_select %p191, %s192, %s193
      %p197 = pneg %p191
      %p198 = scmp.eq.s32.totalorder %s25, 1
      %p199 = por %p197, %p198
      %p200 = scmp.ne.s32.totalorder %s192, %s195
      %p201 = scmp.eq.s32.totalorder %s25, 0
      %p202 = por %p200, %p201
      %p203 = scmp.ne.s32.totalorder %s192, %s195
      %p204 = scmp.eq.s32.totalorder %s30, 1
      %p205 = por %p203, %p204
      %p206 = scmp.ne.s32.totalorder %s195, %s196
      %p207 = scmp.eq.s32.totalorder %s30, 0
      %p208 = por %p206, %p207
      %p209 = scmp.ne.s32.totalorder %s195, %s196
      %p210 = scmp.eq.s32.totalorder %s31, 1
      %p211 = por %p209, %p210
      %p213 = scmp.ne.s32.totalorder %s196, %s212
      %p214 = scmp.eq.s32.totalorder %s31, 0
      %p215 = por %p213, %p214
      %p216 = scmp.le.s32.totalorder 1, %s25
      %p217 = scmp.lt.s32.totalorder %s25, 3
      %p218 = pnand %p216, %p217
      %p219 = pneg %p218
      // Predicated region
      $region9: #{tpu_custom_call.1} parent=5 // pred_check
        _
      $region10: #{tpu_custom_call.1} parent=5 // pred_check_branch
        %221 = sbr.rel (%p218) target = $region12
      $region11: #{tpu_custom_call.1} parent=5 // pred_region
        %s222 = ssub.s32 %s25, 1
        // Predicated region
        $region13: #{tpu_custom_call.1} parent=11 // pred_check
          %p223 = pneg %p72
        $region14: #{tpu_custom_call.1} parent=11 // pred_check_branch
          %225 = sbr.rel (%p223) target = $region16
        $region15: #{tpu_custom_call.1} parent=11 // pred_region
          %227 = vsyncadd [#allocation6], 0
          %s229 = sshll.u32 %s1, 4
          %s230 = int_to_ptr.hbm [resolvable:$true] %s229
          %s231 = sshll.u32 [#allocation5], 4
          %s232 = int_to_ptr.vmem [resolvable:$true] %s231
          %234 = dma.hbm_to_vmem [thread:$0]  %s230, 32, %s232, [#allocation6]
        $region16: #{tpu_custom_call.1} parent=11 // pred_fallthru
          _
        // Predicated region
        $region17: #{tpu_custom_call.1} parent=11 // pred_check
          %p235 = pneg %p93
        $region18: #{tpu_custom_call.1} parent=11 // pred_check_branch
          %237 = sbr.rel (%p235) target = $region20
        $region19: #{tpu_custom_call.1} parent=11 // pred_region
          %239 = vsyncadd [#allocation6], 0
          %s240 = sshll.u32 %s2, 4
          %s241 = int_to_ptr.hbm [resolvable:$true] %s240
          %s242 = sshll.u32 [#allocation7], 4
          %s243 = int_to_ptr.vmem [resolvable:$true] %s242
          %248 = dma.hbm_to_vmem [thread:$0]  %s241, 4096, %s243, [#allocation6], 128, 128, 8
        $region20: #{tpu_custom_call.1} parent=11 // pred_fallthru
          _
        // Predicated region
        $region21: #{tpu_custom_call.1} parent=11 // pred_check
          %p249 = pneg %p114
        $region22: #{tpu_custom_call.1} parent=11 // pred_check_branch
          %251 = sbr.rel (%p249) target = $region24
        $region23: #{tpu_custom_call.1} parent=11 // pred_region
          _
        $region24: #{tpu_custom_call.1} parent=11 // pred_fallthru
          _
        // Predicated region
        $region25: #{tpu_custom_call.1} parent=11 // pred_check
          %p252 = pneg %p135
        $region26: #{tpu_custom_call.1} parent=11 // pred_check_branch
          %254 = sbr.rel (%p252) target = $region28
        $region27: #{tpu_custom_call.1} parent=11 // pred_region
          %256 = vsyncadd [#allocation9], 0
          %s257 = sshll.u32 %s4, 4
          %s258 = int_to_ptr.hbm [resolvable:$true] %s257
          %s259 = sshll.u32 [#allocation8], 4
          %s260 = int_to_ptr.vmem [resolvable:$true] %s259
          %265 = dma.hbm_to_vmem [thread:$0]  %s258, 4096, %s260, [#allocation9], 128, 128, 8
        $region28: #{tpu_custom_call.1} parent=11 // pred_fallthru
          _
        // Predicated region
        $region29: #{tpu_custom_call.1} parent=11 // pred_check
          %p266 = pneg %p156
        $region30: #{tpu_custom_call.1} parent=11 // pred_check_branch
          %268 = sbr.rel (%p266) target = $region32
        $region31: #{tpu_custom_call.1} parent=11 // pred_region
          _
        $region32: #{tpu_custom_call.1} parent=11 // pred_fallthru
          _
      $region12: #{tpu_custom_call.1} parent=5 // pred_fallthru
        _
      %p269 = scmp.lt.s32.totalorder %s25, 2
      // Predicated region
      $region33: #{tpu_custom_call.1} parent=5 // pred_check
        %p270 = pneg %p269
      $region34: #{tpu_custom_call.1} parent=5 // pred_check_branch
        %272 = sbr.rel (%p270) target = $region36
      $region35: #{tpu_custom_call.1} parent=5 // pred_region
        // Predicated region
        $region37: #{tpu_custom_call.1} parent=35 // pred_check
          %p273 = pneg %p45
        $region38: #{tpu_custom_call.1} parent=35 // pred_check_branch
          %275 = sbr.rel (%p273) target = $region40
        $region39: #{tpu_custom_call.1} parent=35 // pred_region
          %s276 = sand.u32 %s35, 1
          %s277 = scalar_lea.sflag [#allocation3], %s276
          %s278 = sand.u32 %s35, 1
          %s279 = smul.addr %s278, 256
          %s280 = scalar_lea.vmem [#allocation2], %s279
          %s281 = smul.u32 16, %s25
          %283 = vsyncadd %s277, 0
          %s284 = smul.addr %s281, 2
          %s285 = smul.addr %s284, 8
          %s286 = scalar_lea.hbm %s0, %s285
          %s287 = sshll.u32 %s286, 4
          %s288 = int_to_ptr.hbm [resolvable:$true] %s287
          %s289 = sshll.u32 %s280, 4
          %s290 = int_to_ptr.vmem [resolvable:$true] %s289
          %295 = dma.hbm_to_vmem [thread:$0]  %s288, 4096, %s290, %s277, 256, 256, 16
        $region40: #{tpu_custom_call.1} parent=35 // pred_fallthru
          _
      $region36: #{tpu_custom_call.1} parent=5 // pred_fallthru
        _
      %p296 = scmp.le.s32.totalorder 1, %s25
      %p297 = scmp.lt.s32.totalorder %s25, 3
      %p298 = pnand %p296, %p297
      %p299 = pneg %p298
      // Predicated region
      $region41: #{tpu_custom_call.1} parent=5 // pred_check
        _
      $region42: #{tpu_custom_call.1} parent=5 // pred_check_branch
        %301 = sbr.rel (%p298) target = $region44
      $region43: #{tpu_custom_call.1} parent=5 // pred_region
        %s302 = ssub.s32 %s25, 1
        %s303 = sand.u32 %s38, 1
        %s304 = scalar_lea.sflag [#allocation3], %s303
        %s305 = sand.u32 %s38, 1
        %s306 = smul.addr %s305, 256
        %s307 = scalar_lea.vmem [#allocation2], %s306
        // Predicated region
        $region45: #{tpu_custom_call.1} parent=43 // pred_check
          %p308 = pneg %p51
        $region46: #{tpu_custom_call.1} parent=43 // pred_check_branch
          %310 = sbr.rel (%p308) target = $region48
        $region47: #{tpu_custom_call.1} parent=43 // pred_region
          %312 = dma.done %s304, 4096
        $region48: #{tpu_custom_call.1} parent=43 // pred_fallthru
          _
        // Predicated region
        $region49: #{tpu_custom_call.1} parent=43 // pred_check
          %p313 = pneg %p72
        $region50: #{tpu_custom_call.1} parent=43 // pred_check_branch
          %315 = sbr.rel (%p313) target = $region52
        $region51: #{tpu_custom_call.1} parent=43 // pred_region
          %317 = dma.done [#allocation6], 32
        $region52: #{tpu_custom_call.1} parent=43 // pred_fallthru
          _
        // Predicated region
        $region53: #{tpu_custom_call.1} parent=43 // pred_check
          %p318 = pneg %p93
        $region54: #{tpu_custom_call.1} parent=43 // pred_check_branch
          %320 = sbr.rel (%p318) target = $region56
        $region55: #{tpu_custom_call.1} parent=43 // pred_region
          %322 = dma.done [#allocation6], 4096
        $region56: #{tpu_custom_call.1} parent=43 // pred_fallthru
          _
        // Predicated region
        $region57: #{tpu_custom_call.1} parent=43 // pred_check
          %p323 = pneg %p135
        $region58: #{tpu_custom_call.1} parent=43 // pred_check_branch
          %325 = sbr.rel (%p323) target = $region60
        $region59: #{tpu_custom_call.1} parent=43 // pred_region
          %327 = dma.done [#allocation9], 4096
        $region60: #{tpu_custom_call.1} parent=43 // pred_fallthru
          _
        %s328 = sand.u32 %s38, 1
        %s329 = scalar_lea.sflag [#allocation3], %s328
        %s330 = sand.u32 %s38, 1
        %s331 = smul.addr %s330, 256
        %s332 = scalar_lea.vmem [#allocation2], %s331
        %p333 = pneg %p51
        %p334 = pneg %p48
        %p335 = pneg %p72
        %p336 = pneg %p69
        %p337 = pneg %p93
        %p338 = pneg %p90
        %p339 = pneg %p114
        %p340 = pneg %p111
        %p341 = pneg %p135
        %p342 = pneg %p132
        %p343 = pneg %p156
        %p344 = pneg %p153
        %p345 = pneg %p182
        %p346 = pneg %p179
        %s347 = sand.u32 %s169, 1
        %s348 = scalar_lea.sflag [#allocation4], %s347
        %s349 = sand.u32 %s169, 1
        %s350 = smul.addr %s349, 256
        %s351 = scalar_lea.vmem [#allocation10], %s350
        %p352 = pneg %p208
        %p353 = pneg %p205
        %s354 = sand.u32 %s195, 1
        %s355 = scalar_lea.sflag [#allocation12], %s354
        %s356 = sand.u32 %s195, 1
        %s357 = scalar_lea.vmem [#allocation11], %s356
        %s358 = smul.u32 16, %s30
        %s359 = smul.u32 16, %s30
        %v360 = vld [vmem:[%s307] sm:$0xff]
        %v361 = vld [vmem:[%s307 + $0x8] sm:$0xff]
        %v362 = vld [vmem:[%s307 + $0x10] sm:$0xff]
        %v363 = vld [vmem:[%s307 + $0x18] sm:$0xff]
        %v364 = vld [vmem:[%s307 + $0x20] sm:$0xff]
        %v365 = vld [vmem:[%s307 + $0x28] sm:$0xff]
        %v366 = vld [vmem:[%s307 + $0x30] sm:$0xff]
        %v367 = vld [vmem:[%s307 + $0x38] sm:$0xff]
        %v368 = vld [vmem:[%s307 + $0x40] sm:$0xff]
        %v369 = vld [vmem:[%s307 + $0x48] sm:$0xff]
        %v370 = vld [vmem:[%s307 + $0x50] sm:$0xff]
        %v371 = vld [vmem:[%s307 + $0x58] sm:$0xff]
        %v372 = vld [vmem:[%s307 + $0x60] sm:$0xff]
        %v373 = vld [vmem:[%s307 + $0x68] sm:$0xff]
        %v374 = vld [vmem:[%s307 + $0x70] sm:$0xff]
        %v375 = vld [vmem:[%s307 + $0x78] sm:$0xff]
        %v376 = vld [vmem:[%s307 + $0x80] sm:$0xff]
        %v377 = vld [vmem:[%s307 + $0x88] sm:$0xff]
        %v378 = vld [vmem:[%s307 + $0x90] sm:$0xff]
        %v379 = vld [vmem:[%s307 + $0x98] sm:$0xff]
        %v380 = vld [vmem:[%s307 + $0xa0] sm:$0xff]
        %v381 = vld [vmem:[%s307 + $0xa8] sm:$0xff]
        %v382 = vld [vmem:[%s307 + $0xb0] sm:$0xff]
        %v383 = vld [vmem:[%s307 + $0xb8] sm:$0xff]
        %v384 = vld [vmem:[%s307 + $0xc0] sm:$0xff]
        %v385 = vld [vmem:[%s307 + $0xc8] sm:$0xff]
        %v386 = vld [vmem:[%s307 + $0xd0] sm:$0xff]
        %v387 = vld [vmem:[%s307 + $0xd8] sm:$0xff]
        %v388 = vld [vmem:[%s307 + $0xe0] sm:$0xff]
        %v389 = vld [vmem:[%s307 + $0xe8] sm:$0xff]
        %v390 = vld [vmem:[%s307 + $0xf0] sm:$0xff]
        %v391 = vld [vmem:[%s307 + $0xf8] sm:$0xff]
        %v392 = vpack.c.bf16 %v362, %v360
        %v393 = vpack.c.bf16 %v363, %v361
        %v394 = vpack.c.bf16 %v366, %v364
        %v395 = vpack.c.bf16 %v367, %v365
        %v396 = vpack.c.bf16 %v370, %v368
        %v397 = vpack.c.bf16 %v371, %v369
        %v398 = vpack.c.bf16 %v374, %v372
        %v399 = vpack.c.bf16 %v375, %v373
        %v400 = vpack.c.bf16 %v378, %v376
        %v401 = vpack.c.bf16 %v379, %v377
        %v402 = vpack.c.bf16 %v382, %v380
        %v403 = vpack.c.bf16 %v383, %v381
        %v404 = vpack.c.bf16 %v386, %v384
        %v405 = vpack.c.bf16 %v387, %v385
        %v406 = vpack.c.bf16 %v390, %v388
        %v407 = vpack.c.bf16 %v391, %v389
        %v408 = vld [vmem:[#allocation7] sm:$0xff]
        %v409 = vld [vmem:[#allocation7 + $0x8] sm:$0xff]
        %v410 = vld [vmem:[#allocation7 + $0x10] sm:$0xff]
        %v411 = vld [vmem:[#allocation7 + $0x18] sm:$0xff]
        %v412 = vld [vmem:[#allocation7 + $0x20] sm:$0xff]
        %v413 = vld [vmem:[#allocation7 + $0x28] sm:$0xff]
        %v414 = vld [vmem:[#allocation7 + $0x30] sm:$0xff]
        %v415 = vld [vmem:[#allocation7 + $0x38] sm:$0xff]
        %v416 = vld [vmem:[#allocation7 + $0x40] sm:$0xff]
        %v417 = vld [vmem:[#allocation7 + $0x48] sm:$0xff]
        %v418 = vld [vmem:[#allocation7 + $0x50] sm:$0xff]
        %v419 = vld [vmem:[#allocation7 + $0x58] sm:$0xff]
        %v420 = vld [vmem:[#allocation7 + $0x60] sm:$0xff]
        %v421 = vld [vmem:[#allocation7 + $0x68] sm:$0xff]
        %v422 = vld [vmem:[#allocation7 + $0x70] sm:$0xff]
        %v423 = vld [vmem:[#allocation7 + $0x78] sm:$0xff]
        %v424 = vld [vmem:[#allocation7 + $0x80] sm:$0xff]
        %v425 = vld [vmem:[#allocation7 + $0x88] sm:$0xff]
        %v426 = vld [vmem:[#allocation7 + $0x90] sm:$0xff]
        %v427 = vld [vmem:[#allocation7 + $0x98] sm:$0xff]
        %v428 = vld [vmem:[#allocation7 + $0xa0] sm:$0xff]
        %v429 = vld [vmem:[#allocation7 + $0xa8] sm:$0xff]
        %v430 = vld [vmem:[#allocation7 + $0xb0] sm:$0xff]
        %v431 = vld [vmem:[#allocation7 + $0xb8] sm:$0xff]
        %v432 = vld [vmem:[#allocation7 + $0xc0] sm:$0xff]
        %v433 = vld [vmem:[#allocation7 + $0xc8] sm:$0xff]
        %v434 = vld [vmem:[#allocation7 + $0xd0] sm:$0xff]
        %v435 = vld [vmem:[#allocation7 + $0xd8] sm:$0xff]
        %v436 = vld [vmem:[#allocation7 + $0xe0] sm:$0xff]
        %v437 = vld [vmem:[#allocation7 + $0xe8] sm:$0xff]
        %v438 = vld [vmem:[#allocation7 + $0xf0] sm:$0xff]
        %v439 = vld [vmem:[#allocation7 + $0xf8] sm:$0xff]
        %v440 = vld [vmem:[%s3] sm:$0x3]
        %v442 = vperm.slane %v440, 0
        %v443 = vperm.slane %v440, 1
        %v478 = vunpack.c.l.b16 %v408
        %v479 = vunpack.c.h.b16 %v408
        %v480 = vunpack.c.l.b16 %v409
        %v481 = vunpack.c.h.b16 %v409
        %v482 = vunpack.c.l.b16 %v410
        %v483 = vunpack.c.h.b16 %v410
        %v484 = vunpack.c.l.b16 %v411
        %v485 = vunpack.c.h.b16 %v411
        %v486 = vunpack.c.l.b16 %v412
        %v487 = vunpack.c.h.b16 %v412
        %v488 = vunpack.c.l.b16 %v413
        %v489 = vunpack.c.h.b16 %v413
        %v490 = vunpack.c.l.b16 %v414
        %v491 = vunpack.c.h.b16 %v414
        %v492 = vunpack.c.l.b16 %v415
        %v493 = vunpack.c.h.b16 %v415
        %v494 = vunpack.c.l.b16 %v416
        %v495 = vunpack.c.h.b16 %v416
        %v496 = vunpack.c.l.b16 %v417
        %v497 = vunpack.c.h.b16 %v417
        %v498 = vunpack.c.l.b16 %v418
        %v499 = vunpack.c.h.b16 %v418
        %v500 = vunpack.c.l.b16 %v419
        %v501 = vunpack.c.h.b16 %v419
        %v502 = vunpack.c.l.b16 %v420
        %v503 = vunpack.c.h.b16 %v420
        %v504 = vunpack.c.l.b16 %v421
        %v505 = vunpack.c.h.b16 %v421
        %v506 = vunpack.c.l.b16 %v422
        %v507 = vunpack.c.h.b16 %v422
        %v508 = vunpack.c.l.b16 %v423
        %v509 = vunpack.c.h.b16 %v423
        %v510 = vunpack.c.l.b16 %v424
        %v511 = vunpack.c.h.b16 %v424
        %v512 = vunpack.c.l.b16 %v425
        %v513 = vunpack.c.h.b16 %v425
        %v514 = vunpack.c.l.b16 %v426
        %v515 = vunpack.c.h.b16 %v426
        %v516 = vunpack.c.l.b16 %v427
        %v517 = vunpack.c.h.b16 %v427
        %v518 = vunpack.c.l.b16 %v428
        %v519 = vunpack.c.h.b16 %v428
        %v520 = vunpack.c.l.b16 %v429
        %v521 = vunpack.c.h.b16 %v429
        %v522 = vunpack.c.l.b16 %v430
        %v523 = vunpack.c.h.b16 %v430
        %v524 = vunpack.c.l.b16 %v431
        %v525 = vunpack.c.h.b16 %v431
        %v526 = vunpack.c.l.b16 %v432
        %v527 = vunpack.c.h.b16 %v432
        %v528 = vunpack.c.l.b16 %v433
        %v529 = vunpack.c.h.b16 %v433
        %v530 = vunpack.c.l.b16 %v434
        %v531 = vunpack.c.h.b16 %v434
        %v532 = vunpack.c.l.b16 %v435
        %v533 = vunpack.c.h.b16 %v435
        %v534 = vunpack.c.l.b16 %v436
        %v535 = vunpack.c.h.b16 %v436
        %v536 = vunpack.c.l.b16 %v437
        %v537 = vunpack.c.h.b16 %v437
        %v538 = vunpack.c.l.b16 %v438
        %v539 = vunpack.c.h.b16 %v438
        %v540 = vunpack.c.l.b16 %v439
        %v541 = vunpack.c.h.b16 %v439
        %v542 = vpack.c.b16 %v480, %v478
        %v543 = vpack.c.b16 %v481, %v479
        %v544 = vpack.c.b16 %v484, %v482
        %v545 = vpack.c.b16 %v485, %v483
        %v546 = vpack.c.b16 %v488, %v486
        %v547 = vpack.c.b16 %v489, %v487
        %v548 = vpack.c.b16 %v492, %v490
        %v549 = vpack.c.b16 %v493, %v491
        %v550 = vpack.c.b16 %v496, %v494
        %v551 = vpack.c.b16 %v497, %v495
        %v552 = vpack.c.b16 %v500, %v498
        %v553 = vpack.c.b16 %v501, %v499
        %v554 = vpack.c.b16 %v504, %v502
        %v555 = vpack.c.b16 %v505, %v503
        %v556 = vpack.c.b16 %v508, %v506
        %v557 = vpack.c.b16 %v509, %v507
        %v558 = vpack.c.b16 %v512, %v510
        %v559 = vpack.c.b16 %v513, %v511
        %v560 = vpack.c.b16 %v516, %v514
        %v561 = vpack.c.b16 %v517, %v515
        %v562 = vpack.c.b16 %v520, %v518
        %v563 = vpack.c.b16 %v521, %v519
        %v564 = vpack.c.b16 %v524, %v522
        %v565 = vpack.c.b16 %v525, %v523
        %v566 = vpack.c.b16 %v528, %v526
        %v567 = vpack.c.b16 %v529, %v527
        %v568 = vpack.c.b16 %v532, %v530
        %v569 = vpack.c.b16 %v533, %v531
        %v570 = vpack.c.b16 %v536, %v534
        %v571 = vpack.c.b16 %v537, %v535
        %v572 = vpack.c.b16 %v540, %v538
        %v573 = vpack.c.b16 %v541, %v539
        %606 = vmatpush.bf16.msra.mxu0 %v556
        %607 = vmatpush.bf16.msra.mxu0 %v554
        %608 = vmatpush.bf16.msra.mxu0 %v552
        %609 = vmatpush.bf16.msra.mxu0 %v550
        %610 = vmatpush.bf16.msra.mxu0 %v548
        %611 = vmatpush.bf16.msra.mxu0 %v546
        %612 = vmatpush.bf16.msra.mxu0 %v544
        %613 = vmatpush.bf16.msra.mxu0 %v542
        %614 = vmatmul.bf16.gmra.mxu0 %v392
        %v615 = vpop.f32.mrf.mxu0
        %v616 = vadd.f32 %v442, %v615
        %v617 = vpop.f32.mrf.mxu0
        %v618 = vadd.f32 %v442, %v617
        %619 = vmatmul.bf16.gmra.mxu0 %v394
        %v620 = vpop.f32.mrf.mxu0
        %v621 = vadd.f32 %v442, %v620
        %v622 = vpop.f32.mrf.mxu0
        %v623 = vadd.f32 %v442, %v622
        %624 = vmatmul.bf16.gmra.mxu0 %v396
        %v625 = vpop.f32.mrf.mxu0
        %v626 = vadd.f32 %v442, %v625
        %v627 = vpop.f32.mrf.mxu0
        %v628 = vadd.f32 %v442, %v627
        %629 = vmatmul.bf16.gmra.mxu0 %v398
        %v630 = vpop.f32.mrf.mxu0
        %v631 = vadd.f32 %v442, %v630
        %v632 = vpop.f32.mrf.mxu0
        %v633 = vadd.f32 %v442, %v632
        %634 = vmatmul.bf16.gmra.mxu0 %v400
        %v635 = vpop.f32.mrf.mxu0
        %v636 = vadd.f32 %v442, %v635
        %v637 = vpop.f32.mrf.mxu0
        %v638 = vadd.f32 %v442, %v637
        %639 = vmatmul.bf16.gmra.mxu0 %v402
        %v640 = vpop.f32.mrf.mxu0
        %v641 = vadd.f32 %v442, %v640
        %v642 = vpop.f32.mrf.mxu0
        %v643 = vadd.f32 %v442, %v642
        %644 = vmatmul.bf16.gmra.mxu0 %v404
        %v645 = vpop.f32.mrf.mxu0
        %v646 = vadd.f32 %v442, %v645
        %v647 = vpop.f32.mrf.mxu0
        %v648 = vadd.f32 %v442, %v647
        %649 = vmatmul.bf16.gmra.mxu0 %v406
        %v650 = vpop.f32.mrf.mxu0
        %v651 = vadd.f32 %v442, %v650
        %v652 = vpop.f32.mrf.mxu0
        %v653 = vadd.f32 %v442, %v652
        %654 = vdwg.mxu0
        %655 = vmatpush.bf16.msra.mxu0 %v572
        %656 = vmatpush.bf16.msra.mxu0 %v570
        %657 = vmatpush.bf16.msra.mxu0 %v568
        %658 = vmatpush.bf16.msra.mxu0 %v566
        %659 = vmatpush.bf16.msra.mxu0 %v564
        %660 = vmatpush.bf16.msra.mxu0 %v562
        %661 = vmatpush.bf16.msra.mxu0 %v560
        %662 = vmatpush.bf16.msra.mxu0 %v558
        %663 = vmatmul.bf16.gmra.mxu0 %v393
        %v664 = vpop.f32.mrf.mxu0
        %v665 = vadd.f32 %v616, %v664
        %v666 = vpop.f32.mrf.mxu0
        %v667 = vadd.f32 %v618, %v666
        %668 = vmatmul.bf16.gmra.mxu0 %v395
        %v669 = vpop.f32.mrf.mxu0
        %v670 = vadd.f32 %v621, %v669
        %v671 = vpop.f32.mrf.mxu0
        %v672 = vadd.f32 %v623, %v671
        %673 = vmatmul.bf16.gmra.mxu0 %v397
        %v674 = vpop.f32.mrf.mxu0
        %v675 = vadd.f32 %v626, %v674
        %v676 = vpop.f32.mrf.mxu0
        %v677 = vadd.f32 %v628, %v676
        %678 = vmatmul.bf16.gmra.mxu0 %v399
        %v679 = vpop.f32.mrf.mxu0
        %v680 = vadd.f32 %v631, %v679
        %v681 = vpop.f32.mrf.mxu0
        %v682 = vadd.f32 %v633, %v681
        %683 = vmatmul.bf16.gmra.mxu0 %v401
        %v684 = vpop.f32.mrf.mxu0
        %v685 = vadd.f32 %v636, %v684
        %v686 = vpop.f32.mrf.mxu0
        %v687 = vadd.f32 %v638, %v686
        %688 = vmatmul.bf16.gmra.mxu0 %v403
        %v689 = vpop.f32.mrf.mxu0
        %v690 = vadd.f32 %v641, %v689
        %v691 = vpop.f32.mrf.mxu0
        %v692 = vadd.f32 %v643, %v691
        %693 = vmatmul.bf16.gmra.mxu0 %v405
        %v694 = vpop.f32.mrf.mxu0
        %v695 = vadd.f32 %v646, %v694
        %v696 = vpop.f32.mrf.mxu0
        %v697 = vadd.f32 %v648, %v696
        %698 = vmatmul.bf16.gmra.mxu0 %v407
        %v699 = vpop.f32.mrf.mxu0
        %v700 = vadd.f32 %v651, %v699
        %v701 = vpop.f32.mrf.mxu0
        %v702 = vadd.f32 %v653, %v701
        %703 = vdwg.mxu0
        %704 = vmatpush.bf16.msra.mxu0 %v557
        %705 = vmatpush.bf16.msra.mxu0 %v555
        %706 = vmatpush.bf16.msra.mxu0 %v553
        %707 = vmatpush.bf16.msra.mxu0 %v551
        %708 = vmatpush.bf16.msra.mxu0 %v549
        %709 = vmatpush.bf16.msra.mxu0 %v547
        %710 = vmatpush.bf16.msra.mxu0 %v545
        %711 = vmatpush.bf16.msra.mxu0 %v543
        %712 = vmatmul.bf16.gmra.mxu0 %v392
        %v713 = vpop.f32.mrf.mxu0
        %v714 = vadd.f32 %v443, %v713
        %v715 = vpop.f32.mrf.mxu0
        %v716 = vadd.f32 %v443, %v715
        %717 = vmatmul.bf16.gmra.mxu0 %v394
        %v718 = vpop.f32.mrf.mxu0
        %v719 = vadd.f32 %v443, %v718
        %v720 = vpop.f32.mrf.mxu0
        %v721 = vadd.f32 %v443, %v720
        %722 = vmatmul.bf16.gmra.mxu0 %v396
        %v723 = vpop.f32.mrf.mxu0
        %v724 = vadd.f32 %v443, %v723
        %v725 = vpop.f32.mrf.mxu0
        %v726 = vadd.f32 %v443, %v725
        %727 = vmatmul.bf16.gmra.mxu0 %v398
        %v728 = vpop.f32.mrf.mxu0
        %v729 = vadd.f32 %v443, %v728
        %v730 = vpop.f32.mrf.mxu0
        %v731 = vadd.f32 %v443, %v730
        %732 = vmatmul.bf16.gmra.mxu0 %v400
        %v733 = vpop.f32.mrf.mxu0
        %v734 = vadd.f32 %v443, %v733
        %v735 = vpop.f32.mrf.mxu0
        %v736 = vadd.f32 %v443, %v735
        %737 = vmatmul.bf16.gmra.mxu0 %v402
        %v738 = vpop.f32.mrf.mxu0
        %v739 = vadd.f32 %v443, %v738
        %v740 = vpop.f32.mrf.mxu0
        %v741 = vadd.f32 %v443, %v740
        %742 = vmatmul.bf16.gmra.mxu0 %v404
        %v743 = vpop.f32.mrf.mxu0
        %v744 = vadd.f32 %v443, %v743
        %v745 = vpop.f32.mrf.mxu0
        %v746 = vadd.f32 %v443, %v745
        %747 = vmatmul.bf16.gmra.mxu0 %v406
        %v748 = vpop.f32.mrf.mxu0
        %v749 = vadd.f32 %v443, %v748
        %v750 = vpop.f32.mrf.mxu0
        %v751 = vadd.f32 %v443, %v750
        %752 = vdwg.mxu0
        %753 = vmatpush.bf16.msra.mxu0 %v573
        %754 = vmatpush.bf16.msra.mxu0 %v571
        %755 = vmatpush.bf16.msra.mxu0 %v569
        %756 = vmatpush.bf16.msra.mxu0 %v567
        %757 = vmatpush.bf16.msra.mxu0 %v565
        %758 = vmatpush.bf16.msra.mxu0 %v563
        %759 = vmatpush.bf16.msra.mxu0 %v561
        %760 = vmatpush.bf16.msra.mxu0 %v559
        %761 = vmatmul.bf16.gmra.mxu0 %v393
        %v762 = vpop.f32.mrf.mxu0
        %v763 = vadd.f32 %v714, %v762
        %v764 = vpop.f32.mrf.mxu0
        %v765 = vadd.f32 %v716, %v764
        %766 = vmatmul.bf16.gmra.mxu0 %v395
        %v767 = vpop.f32.mrf.mxu0
        %v768 = vadd.f32 %v719, %v767
        %v769 = vpop.f32.mrf.mxu0
        %v770 = vadd.f32 %v721, %v769
        %771 = vmatmul.bf16.gmra.mxu0 %v397
        %v772 = vpop.f32.mrf.mxu0
        %v773 = vadd.f32 %v724, %v772
        %v774 = vpop.f32.mrf.mxu0
        %v775 = vadd.f32 %v726, %v774
        %776 = vmatmul.bf16.gmra.mxu0 %v399
        %v777 = vpop.f32.mrf.mxu0
        %v778 = vadd.f32 %v729, %v777
        %v779 = vpop.f32.mrf.mxu0
        %v780 = vadd.f32 %v731, %v779
        %781 = vmatmul.bf16.gmra.mxu0 %v401
        %v782 = vpop.f32.mrf.mxu0
        %v783 = vadd.f32 %v734, %v782
        %v784 = vpop.f32.mrf.mxu0
        %v785 = vadd.f32 %v736, %v784
        %786 = vmatmul.bf16.gmra.mxu0 %v403
        %v787 = vpop.f32.mrf.mxu0
        %v788 = vadd.f32 %v739, %v787
        %v789 = vpop.f32.mrf.mxu0
        %v790 = vadd.f32 %v741, %v789
        %791 = vmatmul.bf16.gmra.mxu0 %v405
        %v792 = vpop.f32.mrf.mxu0
        %v793 = vadd.f32 %v744, %v792
        %v794 = vpop.f32.mrf.mxu0
        %v795 = vadd.f32 %v746, %v794
        %796 = vmatmul.bf16.gmra.mxu0 %v407
        %v797 = vpop.f32.mrf.mxu0
        %v798 = vadd.f32 %v749, %v797
        %v799 = vpop.f32.mrf.mxu0
        %v800 = vadd.f32 %v751, %v799
        %801 = vdwg.mxu0
        %v802 = vmax.f32 %v665, 0.0
        %v803 = vmax.f32 %v763, 0.0
        %v804 = vmax.f32 %v667, 0.0
        %v805 = vmax.f32 %v765, 0.0
        %v806 = vmax.f32 %v670, 0.0
        %v807 = vmax.f32 %v768, 0.0
        %v808 = vmax.f32 %v672, 0.0
        %v809 = vmax.f32 %v770, 0.0
        %v810 = vmax.f32 %v675, 0.0
        %v811 = vmax.f32 %v773, 0.0
        %v812 = vmax.f32 %v677, 0.0
        %v813 = vmax.f32 %v775, 0.0
        %v814 = vmax.f32 %v680, 0.0
        %v815 = vmax.f32 %v778, 0.0
        %v816 = vmax.f32 %v682, 0.0
        %v817 = vmax.f32 %v780, 0.0
        %v818 = vmax.f32 %v685, 0.0
        %v819 = vmax.f32 %v783, 0.0
        %v820 = vmax.f32 %v687, 0.0
        %v821 = vmax.f32 %v785, 0.0
        %v822 = vmax.f32 %v690, 0.0
        %v823 = vmax.f32 %v788, 0.0
        %v824 = vmax.f32 %v692, 0.0
        %v825 = vmax.f32 %v790, 0.0
        %v826 = vmax.f32 %v695, 0.0
        %v827 = vmax.f32 %v793, 0.0
        %v828 = vmax.f32 %v697, 0.0
        %v829 = vmax.f32 %v795, 0.0
        %v830 = vmax.f32 %v700, 0.0
        %v831 = vmax.f32 %v798, 0.0
        %v832 = vmax.f32 %v702, 0.0
        %v833 = vmax.f32 %v800, 0.0
        %834 = vst [vmem:[%s351] sm:$0xff] %v802
        %835 = vst [vmem:[%s351 + $0x8] sm:$0xff] %v803
        %836 = vst [vmem:[%s351 + $0x10] sm:$0xff] %v804
        %837 = vst [vmem:[%s351 + $0x18] sm:$0xff] %v805
        %838 = vst [vmem:[%s351 + $0x20] sm:$0xff] %v806
        %839 = vst [vmem:[%s351 + $0x28] sm:$0xff] %v807
        %840 = vst [vmem:[%s351 + $0x30] sm:$0xff] %v808
        %841 = vst [vmem:[%s351 + $0x38] sm:$0xff] %v809
        %842 = vst [vmem:[%s351 + $0x40] sm:$0xff] %v810
        %843 = vst [vmem:[%s351 + $0x48] sm:$0xff] %v811
        %844 = vst [vmem:[%s351 + $0x50] sm:$0xff] %v812
        %845 = vst [vmem:[%s351 + $0x58] sm:$0xff] %v813
        %846 = vst [vmem:[%s351 + $0x60] sm:$0xff] %v814
        %847 = vst [vmem:[%s351 + $0x68] sm:$0xff] %v815
        %848 = vst [vmem:[%s351 + $0x70] sm:$0xff] %v816
        %849 = vst [vmem:[%s351 + $0x78] sm:$0xff] %v817
        %850 = vst [vmem:[%s351 + $0x80] sm:$0xff] %v818
        %851 = vst [vmem:[%s351 + $0x88] sm:$0xff] %v819
        %852 = vst [vmem:[%s351 + $0x90] sm:$0xff] %v820
        %853 = vst [vmem:[%s351 + $0x98] sm:$0xff] %v821
        %854 = vst [vmem:[%s351 + $0xa0] sm:$0xff] %v822
        %855 = vst [vmem:[%s351 + $0xa8] sm:$0xff] %v823
        %856 = vst [vmem:[%s351 + $0xb0] sm:$0xff] %v824
        %857 = vst [vmem:[%s351 + $0xb8] sm:$0xff] %v825
        %858 = vst [vmem:[%s351 + $0xc0] sm:$0xff] %v826
        %859 = vst [vmem:[%s351 + $0xc8] sm:$0xff] %v827
        %860 = vst [vmem:[%s351 + $0xd0] sm:$0xff] %v828
        %861 = vst [vmem:[%s351 + $0xd8] sm:$0xff] %v829
        %862 = vst [vmem:[%s351 + $0xe0] sm:$0xff] %v830
        %863 = vst [vmem:[%s351 + $0xe8] sm:$0xff] %v831
        %864 = vst [vmem:[%s351 + $0xf0] sm:$0xff] %v832
        %865 = vst [vmem:[%s351 + $0xf8] sm:$0xff] %v833
        %v866 = vpack.c.bf16 %v804, %v802
        %v867 = vpack.c.bf16 %v805, %v803
        %v868 = vpack.c.bf16 %v808, %v806
        %v869 = vpack.c.bf16 %v809, %v807
        %v870 = vpack.c.bf16 %v812, %v810
        %v871 = vpack.c.bf16 %v813, %v811
        %v872 = vpack.c.bf16 %v816, %v814
        %v873 = vpack.c.bf16 %v817, %v815
        %v874 = vpack.c.bf16 %v820, %v818
        %v875 = vpack.c.bf16 %v821, %v819
        %v876 = vpack.c.bf16 %v824, %v822
        %v877 = vpack.c.bf16 %v825, %v823
        %v878 = vpack.c.bf16 %v828, %v826
        %v879 = vpack.c.bf16 %v829, %v827
        %v880 = vpack.c.bf16 %v832, %v830
        %v881 = vpack.c.bf16 %v833, %v831
        %v882 = vld [vmem:[#allocation8] sm:$0xff]
        %v883 = vld [vmem:[#allocation8 + $0x8] sm:$0xff]
        %v884 = vld [vmem:[#allocation8 + $0x10] sm:$0xff]
        %v885 = vld [vmem:[#allocation8 + $0x18] sm:$0xff]
        %v886 = vld [vmem:[#allocation8 + $0x20] sm:$0xff]
        %v887 = vld [vmem:[#allocation8 + $0x28] sm:$0xff]
        %v888 = vld [vmem:[#allocation8 + $0x30] sm:$0xff]
        %v889 = vld [vmem:[#allocation8 + $0x38] sm:$0xff]
        %v890 = vld [vmem:[#allocation8 + $0x40] sm:$0xff]
        %v891 = vld [vmem:[#allocation8 + $0x48] sm:$0xff]
        %v892 = vld [vmem:[#allocation8 + $0x50] sm:$0xff]
        %v893 = vld [vmem:[#allocation8 + $0x58] sm:$0xff]
        %v894 = vld [vmem:[#allocation8 + $0x60] sm:$0xff]
        %v895 = vld [vmem:[#allocation8 + $0x68] sm:$0xff]
        %v896 = vld [vmem:[#allocation8 + $0x70] sm:$0xff]
        %v897 = vld [vmem:[#allocation8 + $0x78] sm:$0xff]
        %v898 = vld [vmem:[#allocation8 + $0x80] sm:$0xff]
        %v899 = vld [vmem:[#allocation8 + $0x88] sm:$0xff]
        %v900 = vld [vmem:[#allocation8 + $0x90] sm:$0xff]
        %v901 = vld [vmem:[#allocation8 + $0x98] sm:$0xff]
        %v902 = vld [vmem:[#allocation8 + $0xa0] sm:$0xff]
        %v903 = vld [vmem:[#allocation8 + $0xa8] sm:$0xff]
        %v904 = vld [vmem:[#allocation8 + $0xb0] sm:$0xff]
        %v905 = vld [vmem:[#allocation8 + $0xb8] sm:$0xff]
        %v906 = vld [vmem:[#allocation8 + $0xc0] sm:$0xff]
        %v907 = vld [vmem:[#allocation8 + $0xc8] sm:$0xff]
        %v908 = vld [vmem:[#allocation8 + $0xd0] sm:$0xff]
        %v909 = vld [vmem:[#allocation8 + $0xd8] sm:$0xff]
        %v910 = vld [vmem:[#allocation8 + $0xe0] sm:$0xff]
        %v911 = vld [vmem:[#allocation8 + $0xe8] sm:$0xff]
        %v912 = vld [vmem:[#allocation8 + $0xf0] sm:$0xff]
        %v913 = vld [vmem:[#allocation8 + $0xf8] sm:$0xff]
        %v914 = vld [vmem:[%s5] sm:$0x3]
        %v916 = vperm.slane %v914, 0
        %v917 = vperm.slane %v914, 1
        %v952 = vunpack.c.l.b16 %v882
        %v953 = vunpack.c.h.b16 %v882
        %v954 = vunpack.c.l.b16 %v883
        %v955 = vunpack.c.h.b16 %v883
        %v956 = vunpack.c.l.b16 %v884
        %v957 = vunpack.c.h.b16 %v884
        %v958 = vunpack.c.l.b16 %v885
        %v959 = vunpack.c.h.b16 %v885
        %v960 = vunpack.c.l.b16 %v886
        %v961 = vunpack.c.h.b16 %v886
        %v962 = vunpack.c.l.b16 %v887
        %v963 = vunpack.c.h.b16 %v887
        %v964 = vunpack.c.l.b16 %v888
        %v965 = vunpack.c.h.b16 %v888
        %v966 = vunpack.c.l.b16 %v889
        %v967 = vunpack.c.h.b16 %v889
        %v968 = vunpack.c.l.b16 %v890
        %v969 = vunpack.c.h.b16 %v890
        %v970 = vunpack.c.l.b16 %v891
        %v971 = vunpack.c.h.b16 %v891
        %v972 = vunpack.c.l.b16 %v892
        %v973 = vunpack.c.h.b16 %v892
        %v974 = vunpack.c.l.b16 %v893
        %v975 = vunpack.c.h.b16 %v893
        %v976 = vunpack.c.l.b16 %v894
        %v977 = vunpack.c.h.b16 %v894
        %v978 = vunpack.c.l.b16 %v895
        %v979 = vunpack.c.h.b16 %v895
        %v980 = vunpack.c.l.b16 %v896
        %v981 = vunpack.c.h.b16 %v896
        %v982 = vunpack.c.l.b16 %v897
        %v983 = vunpack.c.h.b16 %v897
        %v984 = vunpack.c.l.b16 %v898
        %v985 = vunpack.c.h.b16 %v898
        %v986 = vunpack.c.l.b16 %v899
        %v987 = vunpack.c.h.b16 %v899
        %v988 = vunpack.c.l.b16 %v900
        %v989 = vunpack.c.h.b16 %v900
        %v990 = vunpack.c.l.b16 %v901
        %v991 = vunpack.c.h.b16 %v901
        %v992 = vunpack.c.l.b16 %v902
        %v993 = vunpack.c.h.b16 %v902
        %v994 = vunpack.c.l.b16 %v903
        %v995 = vunpack.c.h.b16 %v903
        %v996 = vunpack.c.l.b16 %v904
        %v997 = vunpack.c.h.b16 %v904
        %v998 = vunpack.c.l.b16 %v905
        %v999 = vunpack.c.h.b16 %v905
        %v1000 = vunpack.c.l.b16 %v906
        %v1001 = vunpack.c.h.b16 %v906
        %v1002 = vunpack.c.l.b16 %v907
        %v1003 = vunpack.c.h.b16 %v907
        %v1004 = vunpack.c.l.b16 %v908
        %v1005 = vunpack.c.h.b16 %v908
        %v1006 = vunpack.c.l.b16 %v909
        %v1007 = vunpack.c.h.b16 %v909
        %v1008 = vunpack.c.l.b16 %v910
        %v1009 = vunpack.c.h.b16 %v910
        %v1010 = vunpack.c.l.b16 %v911
        %v1011 = vunpack.c.h.b16 %v911
        %v1012 = vunpack.c.l.b16 %v912
        %v1013 = vunpack.c.h.b16 %v912
        %v1014 = vunpack.c.l.b16 %v913
        %v1015 = vunpack.c.h.b16 %v913
        %v1016 = vpack.c.b16 %v954, %v952
        %v1017 = vpack.c.b16 %v955, %v953
        %v1018 = vpack.c.b16 %v958, %v956
        %v1019 = vpack.c.b16 %v959, %v957
        %v1020 = vpack.c.b16 %v962, %v960
        %v1021 = vpack.c.b16 %v963, %v961
        %v1022 = vpack.c.b16 %v966, %v964
        %v1023 = vpack.c.b16 %v967, %v965
        %v1024 = vpack.c.b16 %v970, %v968
        %v1025 = vpack.c.b16 %v971, %v969
        %v1026 = vpack.c.b16 %v974, %v972
        %v1027 = vpack.c.b16 %v975, %v973
        %v1028 = vpack.c.b16 %v978, %v976
        %v1029 = vpack.c.b16 %v979, %v977
        %v1030 = vpack.c.b16 %v982, %v980
        %v1031 = vpack.c.b16 %v983, %v981
        %v1032 = vpack.c.b16 %v986, %v984
        %v1033 = vpack.c.b16 %v987, %v985
        %v1034 = vpack.c.b16 %v990, %v988
        %v1035 = vpack.c.b16 %v991, %v989
        %v1036 = vpack.c.b16 %v994, %v992
        %v1037 = vpack.c.b16 %v995, %v993
        %v1038 = vpack.c.b16 %v998, %v996
        %v1039 = vpack.c.b16 %v999, %v997
        %v1040 = vpack.c.b16 %v1002, %v1000
        %v1041 = vpack.c.b16 %v1003, %v1001
        %v1042 = vpack.c.b16 %v1006, %v1004
        %v1043 = vpack.c.b16 %v1007, %v1005
        %v1044 = vpack.c.b16 %v1010, %v1008
        %v1045 = vpack.c.b16 %v1011, %v1009
        %v1046 = vpack.c.b16 %v1014, %v1012
        %v1047 = vpack.c.b16 %v1015, %v1013
        %1080 = vmatpush.bf16.msra.mxu0 %v1030
        %1081 = vmatpush.bf16.msra.mxu0 %v1028
        %1082 = vmatpush.bf16.msra.mxu0 %v1026
        %1083 = vmatpush.bf16.msra.mxu0 %v1024
        %1084 = vmatpush.bf16.msra.mxu0 %v1022
        %1085 = vmatpush.bf16.msra.mxu0 %v1020
        %1086 = vmatpush.bf16.msra.mxu0 %v1018
        %1087 = vmatpush.bf16.msra.mxu0 %v1016
        %1088 = vmatmul.bf16.gmra.mxu0 %v866
        %v1089 = vpop.f32.mrf.mxu0
        %v1090 = vadd.f32 %v916, %v1089
        %v1091 = vpop.f32.mrf.mxu0
        %v1092 = vadd.f32 %v916, %v1091
        %1093 = vmatmul.bf16.gmra.mxu0 %v868
        %v1094 = vpop.f32.mrf.mxu0
        %v1095 = vadd.f32 %v916, %v1094
        %v1096 = vpop.f32.mrf.mxu0
        %v1097 = vadd.f32 %v916, %v1096
        %1098 = vmatmul.bf16.gmra.mxu0 %v870
        %v1099 = vpop.f32.mrf.mxu0
        %v1100 = vadd.f32 %v916, %v1099
        %v1101 = vpop.f32.mrf.mxu0
        %v1102 = vadd.f32 %v916, %v1101
        %1103 = vmatmul.bf16.gmra.mxu0 %v872
        %v1104 = vpop.f32.mrf.mxu0
        %v1105 = vadd.f32 %v916, %v1104
        %v1106 = vpop.f32.mrf.mxu0
        %v1107 = vadd.f32 %v916, %v1106
        %1108 = vmatmul.bf16.gmra.mxu0 %v874
        %v1109 = vpop.f32.mrf.mxu0
        %v1110 = vadd.f32 %v916, %v1109
        %v1111 = vpop.f32.mrf.mxu0
        %v1112 = vadd.f32 %v916, %v1111
        %1113 = vmatmul.bf16.gmra.mxu0 %v876
        %v1114 = vpop.f32.mrf.mxu0
        %v1115 = vadd.f32 %v916, %v1114
        %v1116 = vpop.f32.mrf.mxu0
        %v1117 = vadd.f32 %v916, %v1116
        %1118 = vmatmul.bf16.gmra.mxu0 %v878
        %v1119 = vpop.f32.mrf.mxu0
        %v1120 = vadd.f32 %v916, %v1119
        %v1121 = vpop.f32.mrf.mxu0
        %v1122 = vadd.f32 %v916, %v1121
        %1123 = vmatmul.bf16.gmra.mxu0 %v880
        %v1124 = vpop.f32.mrf.mxu0
        %v1125 = vadd.f32 %v916, %v1124
        %v1126 = vpop.f32.mrf.mxu0
        %v1127 = vadd.f32 %v916, %v1126
        %1128 = vdwg.mxu0
        %1129 = vmatpush.bf16.msra.mxu0 %v1046
        %1130 = vmatpush.bf16.msra.mxu0 %v1044
        %1131 = vmatpush.bf16.msra.mxu0 %v1042
        %1132 = vmatpush.bf16.msra.mxu0 %v1040
        %1133 = vmatpush.bf16.msra.mxu0 %v1038
        %1134 = vmatpush.bf16.msra.mxu0 %v1036
        %1135 = vmatpush.bf16.msra.mxu0 %v1034
        %1136 = vmatpush.bf16.msra.mxu0 %v1032
        %1137 = vmatmul.bf16.gmra.mxu0 %v867
        %v1138 = vpop.f32.mrf.mxu0
        %v1139 = vadd.f32 %v1090, %v1138
        %v1140 = vpop.f32.mrf.mxu0
        %v1141 = vadd.f32 %v1092, %v1140
        %1142 = vmatmul.bf16.gmra.mxu0 %v869
        %v1143 = vpop.f32.mrf.mxu0
        %v1144 = vadd.f32 %v1095, %v1143
        %v1145 = vpop.f32.mrf.mxu0
        %v1146 = vadd.f32 %v1097, %v1145
        %1147 = vmatmul.bf16.gmra.mxu0 %v871
        %v1148 = vpop.f32.mrf.mxu0
        %v1149 = vadd.f32 %v1100, %v1148
        %v1150 = vpop.f32.mrf.mxu0
        %v1151 = vadd.f32 %v1102, %v1150
        %1152 = vmatmul.bf16.gmra.mxu0 %v873
        %v1153 = vpop.f32.mrf.mxu0
        %v1154 = vadd.f32 %v1105, %v1153
        %v1155 = vpop.f32.mrf.mxu0
        %v1156 = vadd.f32 %v1107, %v1155
        %1157 = vmatmul.bf16.gmra.mxu0 %v875
        %v1158 = vpop.f32.mrf.mxu0
        %v1159 = vadd.f32 %v1110, %v1158
        %v1160 = vpop.f32.mrf.mxu0
        %v1161 = vadd.f32 %v1112, %v1160
        %1162 = vmatmul.bf16.gmra.mxu0 %v877
        %v1163 = vpop.f32.mrf.mxu0
        %v1164 = vadd.f32 %v1115, %v1163
        %v1165 = vpop.f32.mrf.mxu0
        %v1166 = vadd.f32 %v1117, %v1165
        %1167 = vmatmul.bf16.gmra.mxu0 %v879
        %v1168 = vpop.f32.mrf.mxu0
        %v1169 = vadd.f32 %v1120, %v1168
        %v1170 = vpop.f32.mrf.mxu0
        %v1171 = vadd.f32 %v1122, %v1170
        %1172 = vmatmul.bf16.gmra.mxu0 %v881
        %v1173 = vpop.f32.mrf.mxu0
        %v1174 = vadd.f32 %v1125, %v1173
        %v1175 = vpop.f32.mrf.mxu0
        %v1176 = vadd.f32 %v1127, %v1175
        %1177 = vdwg.mxu0
        %1178 = vmatpush.bf16.msra.mxu0 %v1031
        %1179 = vmatpush.bf16.msra.mxu0 %v1029
        %1180 = vmatpush.bf16.msra.mxu0 %v1027
        %1181 = vmatpush.bf16.msra.mxu0 %v1025
        %1182 = vmatpush.bf16.msra.mxu0 %v1023
        %1183 = vmatpush.bf16.msra.mxu0 %v1021
        %1184 = vmatpush.bf16.msra.mxu0 %v1019
        %1185 = vmatpush.bf16.msra.mxu0 %v1017
        %1186 = vmatmul.bf16.gmra.mxu0 %v866
        %v1187 = vpop.f32.mrf.mxu0
        %v1188 = vadd.f32 %v917, %v1187
        %v1189 = vpop.f32.mrf.mxu0
        %v1190 = vadd.f32 %v917, %v1189
        %1191 = vmatmul.bf16.gmra.mxu0 %v868
        %v1192 = vpop.f32.mrf.mxu0
        %v1193 = vadd.f32 %v917, %v1192
        %v1194 = vpop.f32.mrf.mxu0
        %v1195 = vadd.f32 %v917, %v1194
        %1196 = vmatmul.bf16.gmra.mxu0 %v870
        %v1197 = vpop.f32.mrf.mxu0
        %v1198 = vadd.f32 %v917, %v1197
        %v1199 = vpop.f32.mrf.mxu0
        %v1200 = vadd.f32 %v917, %v1199
        %1201 = vmatmul.bf16.gmra.mxu0 %v872
        %v1202 = vpop.f32.mrf.mxu0
        %v1203 = vadd.f32 %v917, %v1202
        %v1204 = vpop.f32.mrf.mxu0
        %v1205 = vadd.f32 %v917, %v1204
        %1206 = vmatmul.bf16.gmra.mxu0 %v874
        %v1207 = vpop.f32.mrf.mxu0
        %v1208 = vadd.f32 %v917, %v1207
        %v1209 = vpop.f32.mrf.mxu0
        %v1210 = vadd.f32 %v917, %v1209
        %1211 = vmatmul.bf16.gmra.mxu0 %v876
        %v1212 = vpop.f32.mrf.mxu0
        %v1213 = vadd.f32 %v917, %v1212
        %v1214 = vpop.f32.mrf.mxu0
        %v1215 = vadd.f32 %v917, %v1214
        %1216 = vmatmul.bf16.gmra.mxu0 %v878
        %v1217 = vpop.f32.mrf.mxu0
        %v1218 = vadd.f32 %v917, %v1217
        %v1219 = vpop.f32.mrf.mxu0
        %v1220 = vadd.f32 %v917, %v1219
        %1221 = vmatmul.bf16.gmra.mxu0 %v880
        %v1222 = vpop.f32.mrf.mxu0
        %v1223 = vadd.f32 %v917, %v1222
        %v1224 = vpop.f32.mrf.mxu0
        %v1225 = vadd.f32 %v917, %v1224
        %1226 = vdwg.mxu0
        %1227 = vmatpush.bf16.msra.mxu0 %v1047
        %1228 = vmatpush.bf16.msra.mxu0 %v1045
        %1229 = vmatpush.bf16.msra.mxu0 %v1043
        %1230 = vmatpush.bf16.msra.mxu0 %v1041
        %1231 = vmatpush.bf16.msra.mxu0 %v1039
        %1232 = vmatpush.bf16.msra.mxu0 %v1037
        %1233 = vmatpush.bf16.msra.mxu0 %v1035
        %1234 = vmatpush.bf16.msra.mxu0 %v1033
        %1235 = vmatmul.bf16.gmra.mxu0 %v867
        %v1236 = vpop.f32.mrf.mxu0
        %v1237 = vadd.f32 %v1188, %v1236
        %v1238 = vpop.f32.mrf.mxu0
        %v1239 = vadd.f32 %v1190, %v1238
        %1240 = vmatmul.bf16.gmra.mxu0 %v869
        %v1241 = vpop.f32.mrf.mxu0
        %v1242 = vadd.f32 %v1193, %v1241
        %v1243 = vpop.f32.mrf.mxu0
        %v1244 = vadd.f32 %v1195, %v1243
        %1245 = vmatmul.bf16.gmra.mxu0 %v871
        %v1246 = vpop.f32.mrf.mxu0
        %v1247 = vadd.f32 %v1198, %v1246
        %v1248 = vpop.f32.mrf.mxu0
        %v1249 = vadd.f32 %v1200, %v1248
        %1250 = vmatmul.bf16.gmra.mxu0 %v873
        %v1251 = vpop.f32.mrf.mxu0
        %v1252 = vadd.f32 %v1203, %v1251
        %v1253 = vpop.f32.mrf.mxu0
        %v1254 = vadd.f32 %v1205, %v1253
        %1255 = vmatmul.bf16.gmra.mxu0 %v875
        %v1256 = vpop.f32.mrf.mxu0
        %v1257 = vadd.f32 %v1208, %v1256
        %v1258 = vpop.f32.mrf.mxu0
        %v1259 = vadd.f32 %v1210, %v1258
        %1260 = vmatmul.bf16.gmra.mxu0 %v877
        %v1261 = vpop.f32.mrf.mxu0
        %v1262 = vadd.f32 %v1213, %v1261
        %v1263 = vpop.f32.mrf.mxu0
        %v1264 = vadd.f32 %v1215, %v1263
        %1265 = vmatmul.bf16.gmra.mxu0 %v879
        %v1266 = vpop.f32.mrf.mxu0
        %v1267 = vadd.f32 %v1218, %v1266
        %v1268 = vpop.f32.mrf.mxu0
        %v1269 = vadd.f32 %v1220, %v1268
        %1270 = vmatmul.bf16.gmra.mxu0 %v881
        %v1271 = vpop.f32.mrf.mxu0
        %v1272 = vadd.f32 %v1223, %v1271
        %v1273 = vpop.f32.mrf.mxu0
        %v1274 = vadd.f32 %v1225, %v1273
        %1275 = vdwg.mxu0
        %v1276 = vld [vmem:[#allocation5] sm:$0x3]
        %v1278 = vperm.slane %v1276, 0
        %v1279 = vperm.slane %v1276, 1
        %v1282 = vpack.c.bf16 %v1278, %v1278
        %v1283 = vpack.c.bf16 %v1279, %v1279
        %1284 = vmatpush.bf16.msra.mxu0 %v1030
        %1285 = vmatpush.bf16.msra.mxu0 %v1028
        %1286 = vmatpush.bf16.msra.mxu0 %v1026
        %1287 = vmatpush.bf16.msra.mxu0 %v1024
        %1288 = vmatpush.bf16.msra.mxu0 %v1022
        %1289 = vmatpush.bf16.msra.mxu0 %v1020
        %1290 = vmatpush.bf16.msra.mxu0 %v1018
        %1291 = vmatpush.bf16.msra.mxu0 %v1016
        %1292 = vmatmul.bf16.gmra.mxu0 %v1282
        %v1293 = vpop.f32.mrf.mxu0
        %v1294 = vadd.f32 %v916, %v1293
        %v1295 = vpop.f32.mrf.mxu0
        %1296 = vdwg.mxu0
        %1297 = vmatpush.bf16.msra.mxu0 %v1046
        %1298 = vmatpush.bf16.msra.mxu0 %v1044
        %1299 = vmatpush.bf16.msra.mxu0 %v1042
        %1300 = vmatpush.bf16.msra.mxu0 %v1040
        %1301 = vmatpush.bf16.msra.mxu0 %v1038
        %1302 = vmatpush.bf16.msra.mxu0 %v1036
        %1303 = vmatpush.bf16.msra.mxu0 %v1034
        %1304 = vmatpush.bf16.msra.mxu0 %v1032
        %1305 = vmatmul.bf16.gmra.mxu0 %v1283
        %v1306 = vpop.f32.mrf.mxu0
        %v1307 = vadd.f32 %v1294, %v1306
        %v1308 = vpop.f32.mrf.mxu0
        %1309 = vdwg.mxu0
        %1310 = vmatpush.bf16.msra.mxu0 %v1031
        %1311 = vmatpush.bf16.msra.mxu0 %v1029
        %1312 = vmatpush.bf16.msra.mxu0 %v1027
        %1313 = vmatpush.bf16.msra.mxu0 %v1025
        %1314 = vmatpush.bf16.msra.mxu0 %v1023
        %1315 = vmatpush.bf16.msra.mxu0 %v1021
        %1316 = vmatpush.bf16.msra.mxu0 %v1019
        %1317 = vmatpush.bf16.msra.mxu0 %v1017
        %1318 = vmatmul.bf16.gmra.mxu0 %v1282
        %v1319 = vpop.f32.mrf.mxu0
        %v1320 = vadd.f32 %v917, %v1319
        %v1321 = vpop.f32.mrf.mxu0
        %1322 = vdwg.mxu0
        %1323 = vmatpush.bf16.msra.mxu0 %v1047
        %1324 = vmatpush.bf16.msra.mxu0 %v1045
        %1325 = vmatpush.bf16.msra.mxu0 %v1043
        %1326 = vmatpush.bf16.msra.mxu0 %v1041
        %1327 = vmatpush.bf16.msra.mxu0 %v1039
        %1328 = vmatpush.bf16.msra.mxu0 %v1037
        %1329 = vmatpush.bf16.msra.mxu0 %v1035
        %1330 = vmatpush.bf16.msra.mxu0 %v1033
        %1331 = vmatmul.bf16.gmra.mxu0 %v1283
        %v1332 = vpop.f32.mrf.mxu0
        %v1333 = vadd.f32 %v1320, %v1332
        %v1334 = vpop.f32.mrf.mxu0
        %1335 = vdwg.mxu0
        %1336 = vmatpush.xpose.msra.mxu0 %v1176
        %1337 = vmatpush.xpose.msra.mxu0 %v1174
        %1338 = vmatpush.xpose.msra.mxu0 %v1171
        %1339 = vmatpush.xpose.msra.mxu0 %v1169
        %1340 = vmatpush.xpose.msra.mxu0 %v1166
        %1341 = vmatpush.xpose.msra.mxu0 %v1164
        %1342 = vmatpush.xpose.msra.mxu0 %v1161
        %1343 = vmatpush.xpose.msra.mxu0 %v1159
        %1344 = vmatpush.xpose.msra.mxu0 %v1156
        %1345 = vmatpush.xpose.msra.mxu0 %v1154
        %1346 = vmatpush.xpose.msra.mxu0 %v1151
        %1347 = vmatpush.xpose.msra.mxu0 %v1149
        %1348 = vmatpush.xpose.msra.mxu0 %v1146
        %1349 = vmatpush.xpose.msra.mxu0 %v1144
        %1350 = vmatpush.xpose.msra.mxu0 %v1141
        %1351 = vmatpush.xpose.msra.mxu0 %v1139
        %1352 = vmatmul.f32.gmra.mxu0 %v1307
        %v1353 = vpop.f32.mrf.mxu0
        %v1354 = vadd.f32 0.0, %v1353
        %1355 = vdwg.mxu0
        %1356 = vmatpush.xpose.msra.mxu0 %v1274
        %1357 = vmatpush.xpose.msra.mxu0 %v1272
        %1358 = vmatpush.xpose.msra.mxu0 %v1269
        %1359 = vmatpush.xpose.msra.mxu0 %v1267
        %1360 = vmatpush.xpose.msra.mxu0 %v1264
        %1361 = vmatpush.xpose.msra.mxu0 %v1262
        %1362 = vmatpush.xpose.msra.mxu0 %v1259
        %1363 = vmatpush.xpose.msra.mxu0 %v1257
        %1364 = vmatpush.xpose.msra.mxu0 %v1254
        %1365 = vmatpush.xpose.msra.mxu0 %v1252
        %1366 = vmatpush.xpose.msra.mxu0 %v1249
        %1367 = vmatpush.xpose.msra.mxu0 %v1247
        %1368 = vmatpush.xpose.msra.mxu0 %v1244
        %1369 = vmatpush.xpose.msra.mxu0 %v1242
        %1370 = vmatpush.xpose.msra.mxu0 %v1239
        %1371 = vmatpush.xpose.msra.mxu0 %v1237
        %1372 = vmatmul.f32.gmra.mxu0 %v1333
        %v1373 = vpop.f32.mrf.mxu0
        %v1374 = vadd.f32 %v1354, %v1373
        %1375 = vdwg.mxu0
        %v1376 = vmul.f32 %v1139, %v1139
        %v1377 = vmul.f32 %v1237, %v1237
        %v1378 = vmul.f32 %v1141, %v1141
        %v1379 = vmul.f32 %v1239, %v1239
        %v1380 = vmul.f32 %v1144, %v1144
        %v1381 = vmul.f32 %v1242, %v1242
        %v1382 = vmul.f32 %v1146, %v1146
        %v1383 = vmul.f32 %v1244, %v1244
        %v1384 = vmul.f32 %v1149, %v1149
        %v1385 = vmul.f32 %v1247, %v1247
        %v1386 = vmul.f32 %v1151, %v1151
        %v1387 = vmul.f32 %v1249, %v1249
        %v1388 = vmul.f32 %v1154, %v1154
        %v1389 = vmul.f32 %v1252, %v1252
        %v1390 = vmul.f32 %v1156, %v1156
        %v1391 = vmul.f32 %v1254, %v1254
        %v1392 = vmul.f32 %v1159, %v1159
        %v1393 = vmul.f32 %v1257, %v1257
        %v1394 = vmul.f32 %v1161, %v1161
        %v1395 = vmul.f32 %v1259, %v1259
        %v1396 = vmul.f32 %v1164, %v1164
        %v1397 = vmul.f32 %v1262, %v1262
        %v1398 = vmul.f32 %v1166, %v1166
        %v1399 = vmul.f32 %v1264, %v1264
        %v1400 = vmul.f32 %v1169, %v1169
        %v1401 = vmul.f32 %v1267, %v1267
        %v1402 = vmul.f32 %v1171, %v1171
        %v1403 = vmul.f32 %v1269, %v1269
        %v1404 = vmul.f32 %v1174, %v1174
        %v1405 = vmul.f32 %v1272, %v1272
        %v1406 = vmul.f32 %v1176, %v1176
        %v1407 = vmul.f32 %v1274, %v1274
        %1408 = vmatpush.xpose.msra.mxu0 %v1406
        %1409 = vmatpush.xpose.msra.mxu0 %v1404
        %1410 = vmatpush.xpose.msra.mxu0 %v1402
        %1411 = vmatpush.xpose.msra.mxu0 %v1400
        %1412 = vmatpush.xpose.msra.mxu0 %v1398
        %1413 = vmatpush.xpose.msra.mxu0 %v1396
        %1414 = vmatpush.xpose.msra.mxu0 %v1394
        %1415 = vmatpush.xpose.msra.mxu0 %v1392
        %1416 = vmatpush.xpose.msra.mxu0 %v1390
        %1417 = vmatpush.xpose.msra.mxu0 %v1388
        %1418 = vmatpush.xpose.msra.mxu0 %v1386
        %1419 = vmatpush.xpose.msra.mxu0 %v1384
        %1420 = vmatpush.xpose.msra.mxu0 %v1382
        %1421 = vmatpush.xpose.msra.mxu0 %v1380
        %1422 = vmatpush.xpose.msra.mxu0 %v1378
        %1423 = vmatpush.xpose.msra.mxu0 %v1376
        %1424 = vmatmul.f32.gmra.mxu0 1.0
        %v1425 = vpop.f32.mrf.mxu0
        %v1426 = vadd.f32 0.0, %v1425
        %1427 = vdwg.mxu0
        %1428 = vmatpush.xpose.msra.mxu0 %v1407
        %1429 = vmatpush.xpose.msra.mxu0 %v1405
        %1430 = vmatpush.xpose.msra.mxu0 %v1403
        %1431 = vmatpush.xpose.msra.mxu0 %v1401
        %1432 = vmatpush.xpose.msra.mxu0 %v1399
        %1433 = vmatpush.xpose.msra.mxu0 %v1397
        %1434 = vmatpush.xpose.msra.mxu0 %v1395
        %1435 = vmatpush.xpose.msra.mxu0 %v1393
        %1436 = vmatpush.xpose.msra.mxu0 %v1391
        %1437 = vmatpush.xpose.msra.mxu0 %v1389
        %1438 = vmatpush.xpose.msra.mxu0 %v1387
        %1439 = vmatpush.xpose.msra.mxu0 %v1385
        %1440 = vmatpush.xpose.msra.mxu0 %v1383
        %1441 = vmatpush.xpose.msra.mxu0 %v1381
        %1442 = vmatpush.xpose.msra.mxu0 %v1379
        %1443 = vmatpush.xpose.msra.mxu0 %v1377
        %1444 = vmatmul.f32.gmra.mxu0 1.0
        %v1445 = vpop.f32.mrf.mxu0
        %v1446 = vadd.f32 %v1426, %v1445
        %1447 = vdwg.mxu0
        %v1448 = vmul.f32 %v1307, %v1307
        %v1449 = vmul.f32 %v1333, %v1333
        %vm1450 = vcmask 1040384
        %v1451 = vsel %vm1450, %v1448, 0.0
        %v1452 = vsel %vm1450, %v1449, 0.0
        %v1453 = vadd.f32 %v1451, %v1452
        %1454 = vadd.xlane.f32.xlu0 %v1453
        %v1455 = vpop.xlane.xlu0 %1454
        %v1456 = vmax.f32 %v1446, 1e-16
        %v1457 = vrsqrt.pop %v1456
        %v1458 = vmul.f32 %v1457, %v1456
        %v1459 = vmul.f32 %v1458, %v1457
        %v1460 = vmul.f32 0.5, %v1459
        %v1461 = vsub.f32 1.5, %v1460
        %v1462 = vmul.f32 %v1457, %v1461
        %vm1463 = vweird.f32 %v1456
        %vm1464 = vweird.f32 %v1457
        %vm1465 = vmor %vm1463, %vm1464
        %v1466 = vsel %vm1465, %v1457, %v1462
        %v1467 = vmax.f32 %v1455, 1e-16
        %v1468 = vrsqrt.pop %v1467
        %v1469 = vmul.f32 %v1468, %v1467
        %v1470 = vmul.f32 %v1469, %v1468
        %v1471 = vmul.f32 0.5, %v1470
        %v1472 = vsub.f32 1.5, %v1471
        %v1473 = vmul.f32 %v1468, %v1472
        %vm1474 = vweird.f32 %v1467
        %vm1475 = vweird.f32 %v1468
        %vm1476 = vmor %vm1474, %vm1475
        %v1477 = vsel %vm1476, %v1468, %v1473
        %v1478 = vmul.f32 %v1466, %v1477
        %v1479 = vmul.f32 %v1374, %v1478
        %1480 = vst [vmem:[%s357] sm:$0x1] %v1479
        %s1481 = sand.u32 %s169, 1
        %s1482 = scalar_lea.sflag [#allocation4], %s1481
        %s1483 = sand.u32 %s169, 1
        %s1484 = smul.addr %s1483, 256
        %s1485 = scalar_lea.vmem [#allocation10], %s1484
        %s1486 = sand.u32 %s195, 1
        %s1487 = scalar_lea.sflag [#allocation12], %s1486
        %s1488 = sand.u32 %s195, 1
        %s1489 = scalar_lea.vmem [#allocation11], %s1488
        // Predicated region
        $region61: #{tpu_custom_call.1} parent=43 // pred_check
          %p1490 = pneg %p179
        $region62: #{tpu_custom_call.1} parent=43 // pred_check_branch
          %1492 = sbr.rel (%p1490) target = $region64
        $region63: #{tpu_custom_call.1} parent=43 // pred_region
          %s1493 = smul.u32 16, %s30
          %1495 = vsyncadd %s1482, 0
          %s1496 = smul.addr %s1493, 2
          %s1497 = smul.addr %s1496, 8
          %s1498 = scalar_lea.hbm %s6, %s1497
          %s1499 = sshll.u32 %s1485, 4
          %s1500 = int_to_ptr.vmem [resolvable:$true] %s1499
          %s1501 = sshll.u32 %s1498, 4
          %s1502 = int_to_ptr.hbm [resolvable:$true] %s1501
          %1507 = dma.vmem_to_hbm [thread:$0]  %s1500, 4096, %s1502, %s1482, 256, 256, 16
        $region64: #{tpu_custom_call.1} parent=43 // pred_fallthru
          _
        // Predicated region
        $region65: #{tpu_custom_call.1} parent=43 // pred_check
          %p1508 = pneg %p205
        $region66: #{tpu_custom_call.1} parent=43 // pred_check_branch
          %1510 = sbr.rel (%p1508) target = $region68
        $region67: #{tpu_custom_call.1} parent=43 // pred_region
          %1512 = vsyncadd %s1487, 0
          %s1513 = scalar_lea.hbm %s7, %s30
          %s1515 = sshll.u32 %s1489, 4
          %s1516 = int_to_ptr.vmem [resolvable:$true] %s1515
          %s1517 = sshll.u32 %s1513, 4
          %s1518 = int_to_ptr.hbm [resolvable:$true] %s1517
          %1520 = dma.vmem_to_hbm [thread:$0]  %s1516, 16, %s1518, %s1487
        $region68: #{tpu_custom_call.1} parent=43 // pred_fallthru
          _
      $region44: #{tpu_custom_call.1} parent=5 // pred_fallthru
        _
      %p1521 = scmp.le.s32.totalorder 2, %s25
      // Predicated region
      $region69: #{tpu_custom_call.1} parent=5 // pred_check
        %p1522 = pneg %p1521
      $region70: #{tpu_custom_call.1} parent=5 // pred_check_branch
        %1524 = sbr.rel (%p1522) target = $region72
      $region71: #{tpu_custom_call.1} parent=5 // pred_region
        %s1525 = ssub.s32 %s25, 2
        // Predicated region
        $region73: #{tpu_custom_call.1} parent=71 // pred_check
          %p1526 = pneg %p185
        $region74: #{tpu_custom_call.1} parent=71 // pred_check_branch
          %1528 = sbr.rel (%p1526) target = $region76
        $region75: #{tpu_custom_call.1} parent=71 // pred_region
          %s1529 = sand.u32 %s170, 1
          %s1530 = scalar_lea.sflag [#allocation4], %s1529
          %s1531 = sand.u32 %s170, 1
          %s1532 = smul.addr %s1531, 256
          %s1533 = scalar_lea.vmem [#allocation10], %s1532
          %1535 = dma.done %s1530, 4096
        $region76: #{tpu_custom_call.1} parent=71 // pred_fallthru
          _
        // Predicated region
        $region77: #{tpu_custom_call.1} parent=71 // pred_check
          %p1536 = pneg %p211
        $region78: #{tpu_custom_call.1} parent=71 // pred_check_branch
          %1538 = sbr.rel (%p1536) target = $region80
        $region79: #{tpu_custom_call.1} parent=71 // pred_region
          %s1539 = sand.u32 %s196, 1
          %s1540 = scalar_lea.sflag [#allocation12], %s1539
          %s1541 = sand.u32 %s196, 1
          %s1542 = scalar_lea.vmem [#allocation11], %s1541
          %1544 = dma.done %s1540, 16
        $region80: #{tpu_custom_call.1} parent=71 // pred_fallthru
          _
      $region72: #{tpu_custom_call.1} parent=5 // pred_fallthru
        _
    $region6: #{tpu_custom_call.1} parent=1 // loop_footer
      %s29 = sadd.s32 1, %s25
    $region7: #{tpu_custom_call.1} parent=1 // loop_footer_branch
      %24 = sbr.rel target = $region3
    $region8: #{tpu_custom_call.1} parent=1 // loop_exit
      _
    %1545 = vsyncpa [#allocation3], 1
    %s1546 = scalar_lea.sflag [#allocation3], 1
    %1547 = vsyncpa %s1546, 1
    %1548 = vsyncpa [#allocation6], 1
    %1549 = vsyncpa [#allocation9], 1
    %1550 = vsyncpa [#allocation4], 1
    %s1551 = scalar_lea.sflag [#allocation4], 1
    %1552 = vsyncpa %s1551, 1
    %1553 = vsyncpa [#allocation12], 1
    %s1554 = scalar_lea.sflag [#allocation12], 1
    %1555 = vsyncpa %s1554, 1

</llo_original>
